<compile_context>
chip_gen: v5e
topology: v5e:2x2
jax: 0.10.0
libtpu: 0.0.40
codegen_flags: <defaults>
</compile_context>

<pallas_src>
import functools

import jax
import jax.numpy as jnp
from jax.experimental import pallas as pl
from jax.experimental.pallas import tpu as pltpu


# ---------------------------------------------------------------------------
# Fused kernel: one (batch, row-strip) tile per grid step
# ---------------------------------------------------------------------------

def _bottleneck_kernel(x_ref, top_ref, bot_ref,
                       w1_ref, s1_ref, b1_ref,
                       w2_ref, s2_ref, b2_ref,
                       w3_ref, s3_ref, b3_ref,
                       o_ref, *, rows, W):
    P = w2_ref.shape[2]                 # planes
    S = rows * W                        # strip pixels (multiple of 128)
    RW = (rows + 2) * W                 # strip + 1-row halo above/below

    r = pl.program_id(1)
    keep_top = (r > 0).astype(jnp.float32)                       # 0 at image top
    keep_bot = (r < pl.num_programs(1) - 1).astype(jnp.float32)  # 0 at image bottom

    # ---- inputs: channels-first blocks straight from the NCHW tensor -------
    x_cf = x_ref[0]                                   # (Cin, S) f32  (residual)
    x_bf = x_cf.astype(jnp.bfloat16)
    top_bf = top_ref[0, 0].astype(jnp.bfloat16)       # (Cin, W) halo row above
    bot_bf = bot_ref[0, 0].astype(jnp.bfloat16)       # (Cin, W) halo row below

    # ---- conv1 (1x1, channels-first) + bn1 + relu ---------------------------
    w1t = w1_ref[...]                                 # (P, Cin) bf16
    s1 = s1_ref[...]                                  # (P, 1)
    b1 = b1_ref[...]

    def conv1(v):                                     # (Cin, M) -> (P, M) f32
        y = jnp.dot(w1t, v, preferred_element_type=jnp.float32)
        return jnp.maximum(y * s1 + b1, 0.0)

    y1_main = conv1(x_bf)                             # (P, S)
    y1_top = conv1(top_bf) * keep_top                 # (P, W) -> 0 at image top
    y1_bot = conv1(bot_bf) * keep_bot                 # (P, W) -> 0 at image bottom

    # ---- conv2 (3x3, stride 1, pad 1) + bn2 + relu --------------------------
    # Channels-last tap stack built in bf16; only sublane-major concats (no
    # lane-axis concatenates).  The planes-wide transposes are cheap XLU work.
    y1 = jnp.concatenate([y1_top.T.astype(jnp.bfloat16),
                          y1_main.T.astype(jnp.bfloat16),
                          y1_bot.T.astype(jnp.bfloat16)], axis=0)   # (RW, P)

    # +-1 width shifts as "shifted views" (review option (b)); the column
    # masks also neutralize the wrap across image-row boundaries.
    col = jax.lax.broadcasted_iota(jnp.int32, (RW, 1), 0) % W
    not_first = (col != 0).astype(jnp.bfloat16)
    not_last = (col != W - 1).astype(jnp.bfloat16)
    zrow = jnp.zeros((1, P), jnp.bfloat16)
    left = jnp.concatenate([zrow, y1[:-1]], axis=0) * not_first     # j-1 neighbor
    right = jnp.concatenate([y1[1:], zrow], axis=0) * not_last      # j+1 neighbor
    taps = (left, y1, right)                                        # dx = 0, 1, 2

    acc = jnp.zeros((S, P), jnp.float32)
    for dy in range(3):                                             # unrolled 3x3
        for dx in range(3):
            acc = acc + jnp.dot(taps[dx][dy * W:dy * W + S], w2_ref[dy, dx],
                                preferred_element_type=jnp.float32)
    y2 = jnp.maximum(acc * s2_ref[...] + b2_ref[...], 0.0)          # (S, P) f32

    # ---- conv3 (1x1, channels-first) + bn3 + residual + relu ----------------
    y2_cf = y2.T.astype(jnp.bfloat16)                               # (P, S)
    y3 = jnp.dot(w3_ref[...], y2_cf, preferred_element_type=jnp.float32)  # (Cout, S)
    y3 = y3 * s3_ref[...] + b3_ref[...]
    y3 = jnp.maximum(y3 + x_cf, 0.0)                                # residual in f32
    o_ref[0] = y3.astype(o_ref.dtype)                               # lane-dense store


# ---------------------------------------------------------------------------
# Wrapper
# ---------------------------------------------------------------------------

def _fold_bn(gamma, beta, mean, var, eps=1e-5):
    scale = gamma / jnp.sqrt(var + eps)
    bias = beta - mean * scale
    return scale, bias


def _pick_rows(H, W):
    """Smallest divisor of H in [8, 32] with rows*W % 128 == 0 (lane-dense tiles)."""
    cand = [d for d in range(1, H + 1) if H % d == 0 and (d * W) % 128 == 0]
    if not cand:
        return H
    for d in cand:
        if 8 <= d <= 32:
            return d
    return cand[-1] if cand[-1] <= 32 else cand[0]


def bottleneck_forward(x_nchw, params):
    N, Cin, H, W = x_nchw.shape
    planes = params["w1"].shape[1]
    Cout = params["w3"].shape[1]
    # Default Bottleneck config: stride=1, no downsample -> residual adds directly.
    assert Cout == Cin, "stride>1 / downsample path not implemented"

    s1, b1 = _fold_bn(*params["bn1"])
    s2, b2 = _fold_bn(*params["bn2"])
    s3, b3 = _fold_bn(*params["bn3"])

    rows = _pick_rows(H, W)
    nb = H // rows
    S = rows * W

    # Free (metadata-only) reshape: stays channels-first, no HBM transpose.
    x3 = x_nchw.reshape(N, Cin, H * W)

    # 1-row top/bottom halos per row block (tiny HBM traffic).  The dummy rows
    # at the image boundary are masked to zero inside the kernel (== pad 1).
    top = jnp.concatenate([x_nchw[:, :, :1, :],
                           x_nchw[:, :, rows - 1:H - 1:rows, :]], axis=2)
    bot = jnp.concatenate([x_nchw[:, :, rows::rows, :],
                           x_nchw[:, :, H - 1:, :]], axis=2)
    top = jnp.transpose(top, (0, 2, 1, 3))            # (N, nb, Cin, W)
    bot = jnp.transpose(bot, (0, 2, 1, 3))            # (N, nb, Cin, W)

    # Weights pre-transposed for channels-first 1x1 matmuls; bf16 MXU operands.
    w1t = params["w1"].T.astype(jnp.bfloat16)                      # (P, Cin)
    w2 = params["w2"].astype(jnp.bfloat16)                         # (3, 3, P, P)
    w3t = params["w3"].T.astype(jnp.bfloat16)                      # (Cout, P)

    # Explicit VMEM budget (v5e scoped default is only 16 MiB; v7x physical 64 MiB).
    blk_io = 2 * (Cin + Cout) * S * 4                 # double-buffered x / out blocks
    halo_io = 2 * 2 * 2 * Cin * W * 4
    wgt = 2 * 2 * int(w1t.size + w2.size + w3t.size)
    live = 16 * (rows + 2) * W * planes * 4 + 4 * Cout * S * 4
    vmem_limit = int(min(48 * 2 ** 20,
                         max(16 * 2 ** 20, 2 * (blk_io + halo_io + wgt + live))))

    kernel = functools.partial(_bottleneck_kernel, rows=rows, W=W)
    out = pl.pallas_call(
        kernel,
        out_shape=jax.ShapeDtypeStruct((N, Cout, H * W), jnp.float32),
        grid=(N, nb),
        in_specs=[
            pl.BlockSpec((1, Cin, S), lambda n, r: (n, 0, r)),          # x strip
            pl.BlockSpec((1, 1, Cin, W), lambda n, r: (n, r, 0, 0)),    # top halo
            pl.BlockSpec((1, 1, Cin, W), lambda n, r: (n, r, 0, 0)),    # bottom halo
            pl.BlockSpec((planes, Cin), lambda n, r: (0, 0)),           # w1^T (resident)
            pl.BlockSpec((planes, 1), lambda n, r: (0, 0)),             # s1
            pl.BlockSpec((planes, 1), lambda n, r: (0, 0)),             # b1
            pl.BlockSpec((3, 3, planes, planes), lambda n, r: (0, 0, 0, 0)),  # w2
            pl.BlockSpec((1, planes), lambda n, r: (0, 0)),             # s2
            pl.BlockSpec((1, planes), lambda n, r: (0, 0)),             # b2
            pl.BlockSpec((Cout, planes), lambda n, r: (0, 0)),          # w3^T
            pl.BlockSpec((Cout, 1), lambda n, r: (0, 0)),               # s3
            pl.BlockSpec((Cout, 1), lambda n, r: (0, 0)),               # b3
        ],
        out_specs=pl.BlockSpec((1, Cout, S), lambda n, r: (n, 0, r)),
        compiler_params=pltpu.CompilerParams(
            dimension_semantics=("parallel", "parallel"),
            vmem_limit_bytes=vmem_limit),
    )(x3, top, bot,
      w1t, s1.reshape(planes, 1), b1.reshape(planes, 1),
      w2, s2.reshape(1, planes), b2.reshape(1, planes),
      w3t, s3.reshape(Cout, 1), b3.reshape(Cout, 1))

    return out.reshape(N, Cout, H, W)                 # free reshape, already NCHW


# ---------------------------------------------------------------------------
# Pure-JAX reference (matches the kernel's bf16-in / f32-accumulate matmuls)
# ---------------------------------------------------------------------------

def bottleneck_reference(x_nchw, params):
    x = jnp.transpose(x_nchw, (0, 2, 3, 1)).astype(jnp.float32)
    s1, b1 = _fold_bn(*params["bn1"])
    s2, b2 = _fold_bn(*params["bn2"])
    s3, b3 = _fold_bn(*params["bn3"])

    def mm1x1(a, w):
        return jnp.einsum("nhwc,co->nhwo", a.astype(jnp.bfloat16),
                          w.astype(jnp.bfloat16),
                          preferred_element_type=jnp.float32)

    out = jnp.maximum(mm1x1(x, params["w1"]) * s1 + b1, 0.0)
    out = jax.lax.conv_general_dilated(
        out.astype(jnp.bfloat16), params["w2"].astype(jnp.bfloat16),
        window_strides=(1, 1), padding=((1, 1), (1, 1)),
        dimension_numbers=("NHWC", "HWIO", "NHWC"),
        preferred_element_type=jnp.float32)
    out = jnp.maximum(out * s2 + b2, 0.0)
    out = mm1x1(out, params["w3"]) * s3 + b3
    out = jnp.maximum(out + x, 0.0)
    return jnp.transpose(out, (0, 3, 1, 2))


# ---------------------------------------------------------------------------
# Main
# ---------------------------------------------------------------------------

if __name__ == "__main__":
    key = jax.random.PRNGKey(0)
    N, H, W = 2, 16, 16
    planes = 16
    expansion = 4
    inplanes = planes * expansion            # 64 -> residual adds directly

    keys = jax.random.split(key, 8)
    x = jax.random.normal(keys[0], (N, inplanes, H, W), jnp.float32)

    def bn_params(k, c):
        k1, k2, k3, k4 = jax.random.split(k, 4)
        gamma = 1.0 + 0.1 * jax.random.normal(k1, (c,), jnp.float32)
        beta = 0.1 * jax.random.normal(k2, (c,), jnp.float32)
        mean = 0.1 * jax.random.normal(k3, (c,), jnp.float32)
        var = 0.5 + 0.1 * jnp.abs(jax.random.normal(k4, (c,), jnp.float32))
        return gamma, beta, mean, var

    def bf16_roundtrip(w):
        # Store weights at bf16 precision so the kernel (bf16 MXU operands)
        # and the reference see numerically identical weights.
        return w.astype(jnp.bfloat16).astype(jnp.float32)

    params = {
        # 1x1 conv weights stored (Cin, Cout); 3x3 stored (ky, kx, Cin, Cout)
        "w1": bf16_roundtrip(
            0.1 * jax.random.normal(keys[1], (inplanes, planes), jnp.float32)),
        "w2": bf16_roundtrip(
            0.1 * jax.random.normal(keys[2], (3, 3, planes, planes), jnp.float32)),
        "w3": bf16_roundtrip(
            0.1 * jax.random.normal(keys[3], (planes, planes * expansion),
                                    jnp.float32)),
        "bn1": bn_params(keys[4], planes),
        "bn2": bn_params(keys[5], planes),
        "bn3": bn_params(keys[6], planes * expansion),
    }

    out = jax.block_until_ready(bottleneck_forward(x, params))
    ref = bottleneck_reference(x, params)

    assert out.shape == (N, inplanes, H, W)
    max_diff = float(jnp.max(jnp.abs(out - ref)))
    assert jnp.allclose(out, ref, rtol=2e-2, atol=2e-2), (
        f"mismatch vs reference: max abs diff = {max_diff}")

    print("KERNEL_OK")
</pallas_src>

<mosaic_0001>
module attributes {stable_mosaic.version = 11 : i64} {
  func.func @_bottleneck_kernel(%arg0: i32, %arg1: i32, %arg2: memref<1x64x128xf32, #tpu.memory_space<vmem>>, %arg3: memref<1x1x64x16xf32, #tpu.memory_space<vmem>>, %arg4: memref<1x1x64x16xf32, #tpu.memory_space<vmem>>, %arg5: memref<16x64xbf16, #tpu.memory_space<vmem>>, %arg6: memref<16x1xf32, #tpu.memory_space<vmem>>, %arg7: memref<16x1xf32, #tpu.memory_space<vmem>>, %arg8: memref<3x3x16x16xbf16, #tpu.memory_space<vmem>>, %arg9: memref<1x16xf32, #tpu.memory_space<vmem>>, %arg10: memref<1x16xf32, #tpu.memory_space<vmem>>, %arg11: memref<64x16xbf16, #tpu.memory_space<vmem>>, %arg12: memref<64x1xf32, #tpu.memory_space<vmem>>, %arg13: memref<64x1xf32, #tpu.memory_space<vmem>>, %arg14: memref<1x64x128xf32, #tpu.memory_space<vmem>>) attributes {dimension_semantics = [#tpu.dimension_semantics<parallel>, #tpu.dimension_semantics<parallel>], iteration_bounds = array<i64: 2, 2>, scalar_prefetch = 0 : i64, scratch_operands = 0 : i64, tpu.core_type = #tpu.core_type<tc>, window_params = [{transform_indices = @transform_0, window_bounds = array<i64: 1, 64, 128>}, {transform_indices = @transform_1, window_bounds = array<i64: 1, 1, 64, 16>}, {transform_indices = @transform_2, window_bounds = array<i64: 1, 1, 64, 16>}, {pipeline_mode = #tpu.pipeline_mode<synchronous>, transform_indices = @transform_3, window_bounds = array<i64: 16, 64>}, {pipeline_mode = #tpu.pipeline_mode<synchronous>, transform_indices = @transform_4, window_bounds = array<i64: 16, 1>}, {pipeline_mode = #tpu.pipeline_mode<synchronous>, transform_indices = @transform_5, window_bounds = array<i64: 16, 1>}, {pipeline_mode = #tpu.pipeline_mode<synchronous>, transform_indices = @transform_6, window_bounds = array<i64: 3, 3, 16, 16>}, {pipeline_mode = #tpu.pipeline_mode<synchronous>, transform_indices = @transform_7, window_bounds = array<i64: 1, 16>}, {pipeline_mode = #tpu.pipeline_mode<synchronous>, transform_indices = @transform_8, window_bounds = array<i64: 1, 16>}, {pipeline_mode = #tpu.pipeline_mode<synchronous>, transform_indices = @transform_9, window_bounds = array<i64: 64, 16>}, {pipeline_mode = #tpu.pipeline_mode<synchronous>, transform_indices = @transform_10, window_bounds = array<i64: 64, 1>}, {pipeline_mode = #tpu.pipeline_mode<synchronous>, transform_indices = @transform_11, window_bounds = array<i64: 64, 1>}, {transform_indices = @transform_12, window_bounds = array<i64: 1, 64, 128>}]} {
    %c0_i32 = arith.constant 0 : i32
    %0 = arith.cmpi sgt, %arg1, %c0_i32 : i32
    %1 = arith.extui %0 : i1 to i32
    %2 = arith.sitofp %1 : i32 to f32
    %c1_i32 = arith.constant 1 : i32
    %3 = arith.cmpi slt, %arg1, %c1_i32 : i32
    %4 = arith.extui %3 : i1 to i32
    %5 = arith.sitofp %4 : i32 to f32
    %c0 = arith.constant 0 : index
    %c0_0 = arith.constant 0 : index
    %c0_1 = arith.constant 0 : index
    %6 = vector.load %arg2[%c0, %c0_0, %c0_1] : memref<1x64x128xf32, #tpu.memory_space<vmem>>, vector<1x64x128xf32>
    %7 = vector.shape_cast %6 : vector<1x64x128xf32> to vector<64x128xf32>
    %8 = arith.truncf %7 : vector<64x128xf32> to vector<64x128xbf16>
    %c0_2 = arith.constant 0 : index
    %c0_3 = arith.constant 0 : index
    %c0_4 = arith.constant 0 : index
    %c0_5 = arith.constant 0 : index
    %9 = vector.load %arg3[%c0_2, %c0_3, %c0_4, %c0_5] : memref<1x1x64x16xf32, #tpu.memory_space<vmem>>, vector<1x1x64x16xf32>
    %10 = vector.shape_cast %9 : vector<1x1x64x16xf32> to vector<64x16xf32>
    %11 = arith.truncf %10 : vector<64x16xf32> to vector<64x16xbf16>
    %c0_6 = arith.constant 0 : index
    %c0_7 = arith.constant 0 : index
    %c0_8 = arith.constant 0 : index
    %c0_9 = arith.constant 0 : index
    %12 = vector.load %arg4[%c0_6, %c0_7, %c0_8, %c0_9] : memref<1x1x64x16xf32, #tpu.memory_space<vmem>>, vector<1x1x64x16xf32>
    %13 = vector.shape_cast %12 : vector<1x1x64x16xf32> to vector<64x16xf32>
    %14 = arith.truncf %13 : vector<64x16xf32> to vector<64x16xbf16>
    %c0_10 = arith.constant 0 : index
    %c0_11 = arith.constant 0 : index
    %15 = vector.load %arg5[%c0_10, %c0_11] : memref<16x64xbf16, #tpu.memory_space<vmem>>, vector<16x64xbf16>
    %c0_12 = arith.constant 0 : index
    %c0_13 = arith.constant 0 : index
    %16 = vector.load %arg6[%c0_12, %c0_13] : memref<16x1xf32, #tpu.memory_space<vmem>>, vector<16x1xf32>
    %c0_14 = arith.constant 0 : index
    %c0_15 = arith.constant 0 : index
    %17 = vector.load %arg7[%c0_14, %c0_15] : memref<16x1xf32, #tpu.memory_space<vmem>>, vector<16x1xf32>
    %cst = arith.constant dense<0.000000e+00> : vector<16x128xf32>
    %18 = tpu.matmul %15, %8, %cst {dimension_numbers = #tpu.dot_dimension_numbers<[1], [0], [0], [1], [0, 0, 1, 1], [], []>} : vector<16x64xbf16>, vector<64x128xbf16>, vector<16x128xf32> -> vector<16x128xf32>
    %19 = vector.broadcast %16 : vector<16x1xf32> to vector<16x128xf32>
    %20 = arith.mulf %18, %19 : vector<16x128xf32>
    %21 = vector.broadcast %17 : vector<16x1xf32> to vector<16x128xf32>
    %22 = arith.addf %20, %21 : vector<16x128xf32>
    %cst_16 = arith.constant 0.000000e+00 : f32
    %23 = vector.broadcast %cst_16 : f32 to vector<16x128xf32>
    %24 = arith.maximumf %22, %23 : vector<16x128xf32>
    %cst_17 = arith.constant dense<0.000000e+00> : vector<16x16xf32>
    %25 = tpu.matmul %15, %11, %cst_17 {dimension_numbers = #tpu.dot_dimension_numbers<[1], [0], [0], [1], [0, 0, 1, 1], [], []>} : vector<16x64xbf16>, vector<64x16xbf16>, vector<16x16xf32> -> vector<16x16xf32>
    %26 = vector.broadcast %16 : vector<16x1xf32> to vector<16x16xf32>
    %27 = arith.mulf %25, %26 : vector<16x16xf32>
    %28 = vector.broadcast %17 : vector<16x1xf32> to vector<16x16xf32>
    %29 = arith.addf %27, %28 : vector<16x16xf32>
    %cst_18 = arith.constant 0.000000e+00 : f32
    %30 = vector.broadcast %cst_18 : f32 to vector<16x16xf32>
    %31 = arith.maximumf %29, %30 : vector<16x16xf32>
    %32 = vector.broadcast %2 : f32 to vector<16x16xf32>
    %33 = arith.mulf %31, %32 : vector<16x16xf32>
    %cst_19 = arith.constant dense<0.000000e+00> : vector<16x16xf32>
    %34 = tpu.matmul %15, %14, %cst_19 {dimension_numbers = #tpu.dot_dimension_numbers<[1], [0], [0], [1], [0, 0, 1, 1], [], []>} : vector<16x64xbf16>, vector<64x16xbf16>, vector<16x16xf32> -> vector<16x16xf32>
    %35 = vector.broadcast %16 : vector<16x1xf32> to vector<16x16xf32>
    %36 = arith.mulf %34, %35 : vector<16x16xf32>
    %37 = vector.broadcast %17 : vector<16x1xf32> to vector<16x16xf32>
    %38 = arith.addf %36, %37 : vector<16x16xf32>
    %cst_20 = arith.constant 0.000000e+00 : f32
    %39 = vector.broadcast %cst_20 : f32 to vector<16x16xf32>
    %40 = arith.maximumf %38, %39 : vector<16x16xf32>
    %41 = vector.broadcast %5 : f32 to vector<16x16xf32>
    %42 = arith.mulf %40, %41 : vector<16x16xf32>
    %43 = tpu.transpose %33, [1, 0] : vector<16x16xf32> -> vector<16x16xf32>
    %44 = arith.truncf %43 : vector<16x16xf32> to vector<16x16xbf16>
    %45 = tpu.transpose %24, [1, 0] : vector<16x128xf32> -> vector<128x16xf32>
    %46 = arith.truncf %45 : vector<128x16xf32> to vector<128x16xbf16>
    %47 = tpu.transpose %42, [1, 0] : vector<16x16xf32> -> vector<16x16xf32>
    %48 = arith.truncf %47 : vector<16x16xf32> to vector<16x16xbf16>
    %49 = tpu.concatenate %44, %46, %48 in 0 : vector<16x16xbf16>, vector<128x16xbf16>, vector<16x16xbf16> -> vector<160x16xbf16>
    %50 = tpu.iota {dimensions = array<i32: 0>} : vector<160x1xi32>
    %c16_i32 = arith.constant 16 : i32
    %c0_i32_21 = arith.constant 0 : i32
    %51 = arith.cmpi eq, %c16_i32, %c0_i32_21 : i32
    %c1_i32_22 = arith.constant 1 : i32
    %52 = arith.select %51, %c1_i32_22, %c16_i32 : i32
    %53 = vector.broadcast %52 : i32 to vector<160x1xi32>
    %54 = arith.remsi %50, %53 : vector<160x1xi32>
    %c0_i32_23 = arith.constant 0 : i32
    %55 = vector.broadcast %c0_i32_23 : i32 to vector<160x1xi32>
    %56 = arith.cmpi ne, %54, %55 : vector<160x1xi32>
    %c0_i32_24 = arith.constant 0 : i32
    %57 = vector.broadcast %c0_i32_24 : i32 to vector<160x1xi32>
    %58 = arith.cmpi slt, %54, %57 : vector<160x1xi32>
    %c0_i32_25 = arith.constant 0 : i32
    %59 = arith.cmpi slt, %52, %c0_i32_25 : i32
    %60 = vector.broadcast %59 : i1 to vector<160x1xi1>
    %61 = vector.broadcast %60 : vector<160x1xi1> to vector<160x1xi1>
    %62 = arith.xori %58, %61 : vector<160x1xi1>
    %63 = arith.andi %62, %56 : vector<160x1xi1>
    %64 = vector.broadcast %52 : i32 to vector<160x1xi32>
    %65 = arith.addi %54, %64 : vector<160x1xi32>
    %66 = arith.select %63, %65, %54 : vector<160x1xi1>, vector<160x1xi32>
    %c0_i32_26 = arith.constant 0 : i32
    %67 = vector.broadcast %c0_i32_26 : i32 to vector<160x1xi32>
    %68 = arith.cmpi ne, %66, %67 : vector<160x1xi32>
    %69 = arith.extui %68 : vector<160x1xi1> to vector<160x1xi32>
    %70 = arith.sitofp %69 : vector<160x1xi32> to vector<160x1xf32>
    %71 = arith.truncf %70 : vector<160x1xf32> to vector<160x1xbf16>
    %c15_i32 = arith.constant 15 : i32
    %72 = vector.broadcast %c15_i32 : i32 to vector<160x1xi32>
    %73 = arith.cmpi ne, %66, %72 : vector<160x1xi32>
    %74 = arith.extui %73 : vector<160x1xi1> to vector<160x1xi32>
    %75 = arith.sitofp %74 : vector<160x1xi32> to vector<160x1xf32>
    %76 = arith.truncf %75 : vector<160x1xf32> to vector<160x1xbf16>
    %cst_27 = arith.constant 0.000000e+00 : bf16
    %77 = vector.broadcast %cst_27 : bf16 to vector<1x16xbf16>
    %78 = vector.extract_strided_slice %49 {offsets = [0, 0], sizes = [159, 16], strides = [1, 1]} : vector<160x16xbf16> to vector<159x16xbf16>
    %79 = tpu.concatenate %77, %78 in 0 : vector<1x16xbf16>, vector<159x16xbf16> -> vector<160x16xbf16>
    %80 = vector.broadcast %71 : vector<160x1xbf16> to vector<160x16xbf16>
    %81 = arith.mulf %79, %80 : vector<160x16xbf16>
    %82 = vector.extract_strided_slice %49 {offsets = [1, 0], sizes = [159, 16], strides = [1, 1]} : vector<160x16xbf16> to vector<159x16xbf16>
    %83 = tpu.concatenate %82, %77 in 0 : vector<159x16xbf16>, vector<1x16xbf16> -> vector<160x16xbf16>
    %84 = vector.broadcast %76 : vector<160x1xbf16> to vector<160x16xbf16>
    %85 = arith.mulf %83, %84 : vector<160x16xbf16>
    %cst_28 = arith.constant 0.000000e+00 : f32
    %86 = vector.broadcast %cst_28 : f32 to vector<128x16xf32>
    %87 = vector.extract_strided_slice %81 {offsets = [0, 0], sizes = [128, 16], strides = [1, 1]} : vector<160x16xbf16> to vector<128x16xbf16>
    %c0_29 = arith.constant 0 : index
    %c0_30 = arith.constant 0 : index
    %c0_31 = arith.constant 0 : index
    %c0_32 = arith.constant 0 : index
    %88 = vector.load %arg8[%c0_29, %c0_30, %c0_31, %c0_32] : memref<3x3x16x16xbf16, #tpu.memory_space<vmem>>, vector<1x1x16x16xbf16>
    %89 = vector.shape_cast %88 : vector<1x1x16x16xbf16> to vector<16x16xbf16>
    %cst_33 = arith.constant dense<0.000000e+00> : vector<128x16xf32>
    %90 = tpu.matmul %87, %89, %cst_33 {dimension_numbers = #tpu.dot_dimension_numbers<[1], [0], [0], [1], [0, 0, 1, 1], [], []>} : vector<128x16xbf16>, vector<16x16xbf16>, vector<128x16xf32> -> vector<128x16xf32>
    %91 = arith.addf %86, %90 : vector<128x16xf32>
    %92 = vector.extract_strided_slice %49 {offsets = [0, 0], sizes = [128, 16], strides = [1, 1]} : vector<160x16xbf16> to vector<128x16xbf16>
    %c0_34 = arith.constant 0 : index
    %c1 = arith.constant 1 : index
    %c0_35 = arith.constant 0 : index
    %c0_36 = arith.constant 0 : index
    %93 = vector.load %arg8[%c0_34, %c1, %c0_35, %c0_36] : memref<3x3x16x16xbf16, #tpu.memory_space<vmem>>, vector<1x1x16x16xbf16>
    %94 = vector.shape_cast %93 : vector<1x1x16x16xbf16> to vector<16x16xbf16>
    %cst_37 = arith.constant dense<0.000000e+00> : vector<128x16xf32>
    %95 = tpu.matmul %92, %94, %cst_37 {dimension_numbers = #tpu.dot_dimension_numbers<[1], [0], [0], [1], [0, 0, 1, 1], [], []>} : vector<128x16xbf16>, vector<16x16xbf16>, vector<128x16xf32> -> vector<128x16xf32>
    %96 = arith.addf %91, %95 : vector<128x16xf32>
    %97 = vector.extract_strided_slice %85 {offsets = [0, 0], sizes = [128, 16], strides = [1, 1]} : vector<160x16xbf16> to vector<128x16xbf16>
    %c0_38 = arith.constant 0 : index
    %c2 = arith.constant 2 : index
    %c0_39 = arith.constant 0 : index
    %c0_40 = arith.constant 0 : index
    %98 = vector.load %arg8[%c0_38, %c2, %c0_39, %c0_40] : memref<3x3x16x16xbf16, #tpu.memory_space<vmem>>, vector<1x1x16x16xbf16>
    %99 = vector.shape_cast %98 : vector<1x1x16x16xbf16> to vector<16x16xbf16>
    %cst_41 = arith.constant dense<0.000000e+00> : vector<128x16xf32>
    %100 = tpu.matmul %97, %99, %cst_41 {dimension_numbers = #tpu.dot_dimension_numbers<[1], [0], [0], [1], [0, 0, 1, 1], [], []>} : vector<128x16xbf16>, vector<16x16xbf16>, vector<128x16xf32> -> vector<128x16xf32>
    %101 = arith.addf %96, %100 : vector<128x16xf32>
    %102 = vector.extract_strided_slice %81 {offsets = [16, 0], sizes = [128, 16], strides = [1, 1]} : vector<160x16xbf16> to vector<128x16xbf16>
    %c1_42 = arith.constant 1 : index
    %c0_43 = arith.constant 0 : index
    %c0_44 = arith.constant 0 : index
    %c0_45 = arith.constant 0 : index
    %103 = vector.load %arg8[%c1_42, %c0_43, %c0_44, %c0_45] : memref<3x3x16x16xbf16, #tpu.memory_space<vmem>>, vector<1x1x16x16xbf16>
    %104 = vector.shape_cast %103 : vector<1x1x16x16xbf16> to vector<16x16xbf16>
    %cst_46 = arith.constant dense<0.000000e+00> : vector<128x16xf32>
    %105 = tpu.matmul %102, %104, %cst_46 {dimension_numbers = #tpu.dot_dimension_numbers<[1], [0], [0], [1], [0, 0, 1, 1], [], []>} : vector<128x16xbf16>, vector<16x16xbf16>, vector<128x16xf32> -> vector<128x16xf32>
    %106 = arith.addf %101, %105 : vector<128x16xf32>
    %107 = vector.extract_strided_slice %49 {offsets = [16, 0], sizes = [128, 16], strides = [1, 1]} : vector<160x16xbf16> to vector<128x16xbf16>
    %c1_47 = arith.constant 1 : index
    %c1_48 = arith.constant 1 : index
    %c0_49 = arith.constant 0 : index
    %c0_50 = arith.constant 0 : index
    %108 = vector.load %arg8[%c1_47, %c1_48, %c0_49, %c0_50] : memref<3x3x16x16xbf16, #tpu.memory_space<vmem>>, vector<1x1x16x16xbf16>
    %109 = vector.shape_cast %108 : vector<1x1x16x16xbf16> to vector<16x16xbf16>
    %cst_51 = arith.constant dense<0.000000e+00> : vector<128x16xf32>
    %110 = tpu.matmul %107, %109, %cst_51 {dimension_numbers = #tpu.dot_dimension_numbers<[1], [0], [0], [1], [0, 0, 1, 1], [], []>} : vector<128x16xbf16>, vector<16x16xbf16>, vector<128x16xf32> -> vector<128x16xf32>
    %111 = arith.addf %106, %110 : vector<128x16xf32>
    %112 = vector.extract_strided_slice %85 {offsets = [16, 0], sizes = [128, 16], strides = [1, 1]} : vector<160x16xbf16> to vector<128x16xbf16>
    %c1_52 = arith.constant 1 : index
    %c2_53 = arith.constant 2 : index
    %c0_54 = arith.constant 0 : index
    %c0_55 = arith.constant 0 : index
    %113 = vector.load %arg8[%c1_52, %c2_53, %c0_54, %c0_55] : memref<3x3x16x16xbf16, #tpu.memory_space<vmem>>, vector<1x1x16x16xbf16>
    %114 = vector.shape_cast %113 : vector<1x1x16x16xbf16> to vector<16x16xbf16>
    %cst_56 = arith.constant dense<0.000000e+00> : vector<128x16xf32>
    %115 = tpu.matmul %112, %114, %cst_56 {dimension_numbers = #tpu.dot_dimension_numbers<[1], [0], [0], [1], [0, 0, 1, 1], [], []>} : vector<128x16xbf16>, vector<16x16xbf16>, vector<128x16xf32> -> vector<128x16xf32>
    %116 = arith.addf %111, %115 : vector<128x16xf32>
    %117 = vector.extract_strided_slice %81 {offsets = [32, 0], sizes = [128, 16], strides = [1, 1]} : vector<160x16xbf16> to vector<128x16xbf16>
    %c2_57 = arith.constant 2 : index
    %c0_58 = arith.constant 0 : index
    %c0_59 = arith.constant 0 : index
    %c0_60 = arith.constant 0 : index
    %118 = vector.load %arg8[%c2_57, %c0_58, %c0_59, %c0_60] : memref<3x3x16x16xbf16, #tpu.memory_space<vmem>>, vector<1x1x16x16xbf16>
    %119 = vector.shape_cast %118 : vector<1x1x16x16xbf16> to vector<16x16xbf16>
    %cst_61 = arith.constant dense<0.000000e+00> : vector<128x16xf32>
    %120 = tpu.matmul %117, %119, %cst_61 {dimension_numbers = #tpu.dot_dimension_numbers<[1], [0], [0], [1], [0, 0, 1, 1], [], []>} : vector<128x16xbf16>, vector<16x16xbf16>, vector<128x16xf32> -> vector<128x16xf32>
    %121 = arith.addf %116, %120 : vector<128x16xf32>
    %122 = vector.extract_strided_slice %49 {offsets = [32, 0], sizes = [128, 16], strides = [1, 1]} : vector<160x16xbf16> to vector<128x16xbf16>
    %c2_62 = arith.constant 2 : index
    %c1_63 = arith.constant 1 : index
    %c0_64 = arith.constant 0 : index
    %c0_65 = arith.constant 0 : index
    %123 = vector.load %arg8[%c2_62, %c1_63, %c0_64, %c0_65] : memref<3x3x16x16xbf16, #tpu.memory_space<vmem>>, vector<1x1x16x16xbf16>
    %124 = vector.shape_cast %123 : vector<1x1x16x16xbf16> to vector<16x16xbf16>
    %cst_66 = arith.constant dense<0.000000e+00> : vector<128x16xf32>
    %125 = tpu.matmul %122, %124, %cst_66 {dimension_numbers = #tpu.dot_dimension_numbers<[1], [0], [0], [1], [0, 0, 1, 1], [], []>} : vector<128x16xbf16>, vector<16x16xbf16>, vector<128x16xf32> -> vector<128x16xf32>
    %126 = arith.addf %121, %125 : vector<128x16xf32>
    %127 = vector.extract_strided_slice %85 {offsets = [32, 0], sizes = [128, 16], strides = [1, 1]} : vector<160x16xbf16> to vector<128x16xbf16>
    %c2_67 = arith.constant 2 : index
    %c2_68 = arith.constant 2 : index
    %c0_69 = arith.constant 0 : index
    %c0_70 = arith.constant 0 : index
    %128 = vector.load %arg8[%c2_67, %c2_68, %c0_69, %c0_70] : memref<3x3x16x16xbf16, #tpu.memory_space<vmem>>, vector<1x1x16x16xbf16>
    %129 = vector.shape_cast %128 : vector<1x1x16x16xbf16> to vector<16x16xbf16>
    %cst_71 = arith.constant dense<0.000000e+00> : vector<128x16xf32>
    %130 = tpu.matmul %127, %129, %cst_71 {dimension_numbers = #tpu.dot_dimension_numbers<[1], [0], [0], [1], [0, 0, 1, 1], [], []>} : vector<128x16xbf16>, vector<16x16xbf16>, vector<128x16xf32> -> vector<128x16xf32>
    %131 = arith.addf %126, %130 : vector<128x16xf32>
    %c0_72 = arith.constant 0 : index
    %c0_73 = arith.constant 0 : index
    %132 = vector.load %arg9[%c0_72, %c0_73] : memref<1x16xf32, #tpu.memory_space<vmem>>, vector<1x16xf32>
    %133 = vector.broadcast %132 : vector<1x16xf32> to vector<128x16xf32>
    %134 = arith.mulf %131, %133 : vector<128x16xf32>
    %c0_74 = arith.constant 0 : index
    %c0_75 = arith.constant 0 : index
    %135 = vector.load %arg10[%c0_74, %c0_75] : memref<1x16xf32, #tpu.memory_space<vmem>>, vector<1x16xf32>
    %136 = vector.broadcast %135 : vector<1x16xf32> to vector<128x16xf32>
    %137 = arith.addf %134, %136 : vector<128x16xf32>
    %cst_76 = arith.constant 0.000000e+00 : f32
    %138 = vector.broadcast %cst_76 : f32 to vector<128x16xf32>
    %139 = arith.maximumf %137, %138 : vector<128x16xf32>
    %140 = tpu.transpose %139, [1, 0] : vector<128x16xf32> -> vector<16x128xf32>
    %141 = arith.truncf %140 : vector<16x128xf32> to vector<16x128xbf16>
    %c0_77 = arith.constant 0 : index
    %c0_78 = arith.constant 0 : index
    %142 = vector.load %arg11[%c0_77, %c0_78] : memref<64x16xbf16, #tpu.memory_space<vmem>>, vector<64x16xbf16>
    %cst_79 = arith.constant dense<0.000000e+00> : vector<64x128xf32>
    %143 = tpu.matmul %142, %141, %cst_79 {dimension_numbers = #tpu.dot_dimension_numbers<[1], [0], [0], [1], [0, 0, 1, 1], [], []>} : vector<64x16xbf16>, vector<16x128xbf16>, vector<64x128xf32> -> vector<64x128xf32>
    %c0_80 = arith.constant 0 : index
    %c0_81 = arith.constant 0 : index
    %144 = vector.load %arg12[%c0_80, %c0_81] : memref<64x1xf32, #tpu.memory_space<vmem>>, vector<64x1xf32>
    %145 = vector.broadcast %144 : vector<64x1xf32> to vector<64x128xf32>
    %146 = arith.mulf %143, %145 : vector<64x128xf32>
    %c0_82 = arith.constant 0 : index
    %c0_83 = arith.constant 0 : index
    %147 = vector.load %arg13[%c0_82, %c0_83] : memref<64x1xf32, #tpu.memory_space<vmem>>, vector<64x1xf32>
    %148 = vector.broadcast %147 : vector<64x1xf32> to vector<64x128xf32>
    %149 = arith.addf %146, %148 : vector<64x128xf32>
    %150 = arith.addf %149, %7 : vector<64x128xf32>
    %cst_84 = arith.constant 0.000000e+00 : f32
    %151 = vector.broadcast %cst_84 : f32 to vector<64x128xf32>
    %152 = arith.maximumf %150, %151 : vector<64x128xf32>
    %c0_85 = arith.constant 0 : index
    %c0_86 = arith.constant 0 : index
    %c0_87 = arith.constant 0 : index
    %153 = vector.load %arg14[%c0_85, %c0_86, %c0_87] : memref<1x64x128xf32, #tpu.memory_space<vmem>>, vector<1x64x128xf32>
    %154 = vector.shape_cast %153 : vector<1x64x128xf32> to vector<64x128xf32>
    %155 = vector.shape_cast %152 : vector<64x128xf32> to vector<1x64x128xf32>
    tpu.vector_store %arg14[%c0_85, %c0_86, %c0_87], %155 {strides = array<i32>} : memref<1x64x128xf32, #tpu.memory_space<vmem>>, vector<1x64x128xf32>,
    return
  }
  func.func @transform_0(%arg0: i32, %arg1: i32) -> (i32, i32, i32) {
    %c0_i32 = arith.constant 0 : i32
    %c0_i32_0 = arith.constant 0 : i32
    return %arg0, %c0_i32, %arg1 : i32, i32, i32
  }
  func.func @transform_1(%arg0: i32, %arg1: i32) -> (i32, i32, i32, i32) {
    %c0_i32 = arith.constant 0 : i32
    %c0_i32_0 = arith.constant 0 : i32
    %c0_i32_1 = arith.constant 0 : i32
    return %arg0, %arg1, %c0_i32, %c0_i32_0 : i32, i32, i32, i32
  }
  func.func @transform_2(%arg0: i32, %arg1: i32) -> (i32, i32, i32, i32) {
    %c0_i32 = arith.constant 0 : i32
    %c0_i32_0 = arith.constant 0 : i32
    %c0_i32_1 = arith.constant 0 : i32
    return %arg0, %arg1, %c0_i32, %c0_i32_0 : i32, i32, i32, i32
  }
  func.func @transform_3(%arg0: i32, %arg1: i32) -> (i32, i32) {
    %c0_i32 = arith.constant 0 : i32
    %c0_i32_0 = arith.constant 0 : i32
    %c0_i32_1 = arith.constant 0 : i32
    return %c0_i32, %c0_i32_0 : i32, i32
  }
  func.func @transform_4(%arg0: i32, %arg1: i32) -> (i32, i32) {
    %c0_i32 = arith.constant 0 : i32
    %c0_i32_0 = arith.constant 0 : i32
    %c0_i32_1 = arith.constant 0 : i32
    return %c0_i32, %c0_i32_0 : i32, i32
  }
  func.func @transform_5(%arg0: i32, %arg1: i32) -> (i32, i32) {
    %c0_i32 = arith.constant 0 : i32
    %c0_i32_0 = arith.constant 0 : i32
    %c0_i32_1 = arith.constant 0 : i32
    return %c0_i32, %c0_i32_0 : i32, i32
  }
  func.func @transform_6(%arg0: i32, %arg1: i32) -> (i32, i32, i32, i32) {
    %c0_i32 = arith.constant 0 : i32
    %c0_i32_0 = arith.constant 0 : i32
    %c0_i32_1 = arith.constant 0 : i32
    %c0_i32_2 = arith.constant 0 : i32
    %c0_i32_3 = arith.constant 0 : i32
    return %c0_i32, %c0_i32_0, %c0_i32_1, %c0_i32_2 : i32, i32, i32, i32
  }
  func.func @transform_7(%arg0: i32, %arg1: i32) -> (i32, i32) {
    %c0_i32 = arith.constant 0 : i32
    %c0_i32_0 = arith.constant 0 : i32
    %c0_i32_1 = arith.constant 0 : i32
    return %c0_i32, %c0_i32_0 : i32, i32
  }
  func.func @transform_8(%arg0: i32, %arg1: i32) -> (i32, i32) {
    %c0_i32 = arith.constant 0 : i32
    %c0_i32_0 = arith.constant 0 : i32
    %c0_i32_1 = arith.constant 0 : i32
    return %c0_i32, %c0_i32_0 : i32, i32
  }
  func.func @transform_9(%arg0: i32, %arg1: i32) -> (i32, i32) {
    %c0_i32 = arith.constant 0 : i32
    %c0_i32_0 = arith.constant 0 : i32
    %c0_i32_1 = arith.constant 0 : i32
    return %c0_i32, %c0_i32_0 : i32, i32
  }
  func.func @transform_10(%arg0: i32, %arg1: i32) -> (i32, i32) {
    %c0_i32 = arith.constant 0 : i32
    %c0_i32_0 = arith.constant 0 : i32
    %c0_i32_1 = arith.constant 0 : i32
    return %c0_i32, %c0_i32_0 : i32, i32
  }
  func.func @transform_11(%arg0: i32, %arg1: i32) -> (i32, i32) {
    %c0_i32 = arith.constant 0 : i32
    %c0_i32_0 = arith.constant 0 : i32
    %c0_i32_1 = arith.constant 0 : i32
    return %c0_i32, %c0_i32_0 : i32, i32
  }
  func.func @transform_12(%arg0: i32, %arg1: i32) -> (i32, i32, i32) {
    %c0_i32 = arith.constant 0 : i32
    %c0_i32_0 = arith.constant 0 : i32
    return %arg0, %c0_i32, %arg1 : i32, i32, i32
  }
}

</mosaic_0001>

<llo_original>
// kernel: tpu_custom_call.1
$region0: #{tpu_custom_call.1}
  #allocation0 [shape = 'u32[]', space=smem, size = 0x4, offset = 0x4, fixed_abs, tag = 'smem constant byte address 0x4 - core index']
  #allocation1 [shape = 'u32[72,128]{1,0:T(1,128)}', space=vmem, size = 0x9000, scoped, tag = 'internal scratch']
  %s0 = inlined_call_operand.vmem [shape: f32[2,64,256], index: 0, kind: input, shape index: {}]
  %s1 = inlined_call_operand.vmem [shape: f32[2,2,64,16], index: 1, kind: input, shape index: {}]
  %s2 = inlined_call_operand.vmem [shape: f32[2,2,64,16], index: 2, kind: input, shape index: {}]
  %s3 = inlined_call_operand.vmem [shape: bf16[16,64], index: 3, kind: input, shape index: {}]
  %s4 = inlined_call_operand.vmem [shape: f32[16,1], index: 4, kind: input, shape index: {}]
  %s5 = inlined_call_operand.vmem [shape: f32[16,1], index: 5, kind: input, shape index: {}]
  %s6 = inlined_call_operand.vmem [shape: bf16[3,3,16,16], index: 6, kind: input, shape index: {}]
  %s7 = inlined_call_operand.vmem [shape: f32[1,16], index: 7, kind: input, shape index: {}]
  %s8 = inlined_call_operand.vmem [shape: f32[1,16], index: 8, kind: input, shape index: {}]
  %s9 = inlined_call_operand.vmem [shape: bf16[64,16], index: 9, kind: input, shape index: {}]
  %s10 = inlined_call_operand.vmem [shape: f32[64,1], index: 10, kind: input, shape index: {}]
  %s11 = inlined_call_operand.vmem [shape: f32[64,1], index: 11, kind: input, shape index: {}]
  %s12 = inlined_call_operand.hbm [shape: f32[2,64,256], index: 12, kind: output, shape index: {}]
  %s13 = sld [smem:[#allocation0]]
  $region119: #{tpu_custom_call.1} parent=0
    _
  %s15 = ssub.s32 1, %s13
  %s16 = scalar_select 0, %s15, %s13
  $region1: #{tpu_custom_call.1} parent=0
    #allocation2 [shape = 'u8[65536]{0}', space=vmem, size = 0x10000, scoped, tag = 'input window, operand 0']
    #allocation3 [shape = 'u8[65536]{0}', space=vmem, size = 0x10000, scoped, tag = 'output window, operand 0']
    #allocation4 [shape = 's32[2]{0}', space=sflag, size = 0x8, scoped, tag = 'scoped memory for tpu_custom_call.1']
    %17 = vsyncpa [#allocation4], 0
    %s18 = scalar_lea.sflag [#allocation4], 1
    %19 = vsyncpa %s18, 0
    loop: start=0, step=1, limit=6
    $region2: #{tpu_custom_call.1} parent=1 // loop_pre_header
      _
    $region3: #{tpu_custom_call.1} parent=1 // loop_header
      %s21 = sphi 0, %s25
      %p22 = scmp.ge.s32.totalorder %s21, 6
      %s28 = sphi 0, %s40
      %s29 = sphi 0, %s36
      %s30 = sphi 0, %s28
      %s31 = sphi 0, %s29
      %s32 = sphi 0, %s30
      %s33 = sphi 0, %s31
      %s45 = sphi 0, %s47
      %s48 = sphi 0, %s45
      %s49 = sphi 0, %s48
      %s65 = sphi 0, %s49
      %s73 = sphi 0, %s75
      %s76 = sphi 0, %s73
      %s77 = sphi 0, %s76
      %s93 = sphi 0, %s77
      %s101 = sphi 0, %s103
      %s104 = sphi 0, %s101
      %s105 = sphi 0, %s104
      %s121 = sphi 0, %s105
      %s125 = sphi 0, %s125
      %s127 = sphi 0, %s125
      %s128 = sphi 0, %s127
      %s142 = sphi 0, %s128
      %s146 = sphi 0, %s146
      %s148 = sphi 0, %s146
      %s149 = sphi 0, %s148
      %s163 = sphi 0, %s149
      %s167 = sphi 0, %s167
      %s169 = sphi 0, %s167
      %s170 = sphi 0, %s169
      %s184 = sphi 0, %s170
      %s188 = sphi 0, %s188
      %s190 = sphi 0, %s188
      %s191 = sphi 0, %s190
      %s205 = sphi 0, %s191
      %s209 = sphi 0, %s209
      %s211 = sphi 0, %s209
      %s212 = sphi 0, %s211
      %s226 = sphi 0, %s212
      %s230 = sphi 0, %s230
      %s232 = sphi 0, %s230
      %s233 = sphi 0, %s232
      %s247 = sphi 0, %s233
      %s251 = sphi 0, %s251
      %s253 = sphi 0, %s251
      %s254 = sphi 0, %s253
      %s268 = sphi 0, %s254
      %s272 = sphi 0, %s272
      %s274 = sphi 0, %s272
      %s275 = sphi 0, %s274
      %s289 = sphi 0, %s275
      %s293 = sphi 0, %s293
      %s295 = sphi 0, %s293
      %s296 = sphi 0, %s295
      %s310 = sphi 0, %s296
      %s318 = sphi 0, %s320
      %s321 = sphi 0, %s318
      %s322 = sphi 0, %s321
      %s338 = sphi 0, %s322
    $region4: #{tpu_custom_call.1} parent=1 // loop_header_branch
      %24 = sbr.rel (%p22) target = $region8
    $region5: #{tpu_custom_call.1} parent=1 // loop_body
      %s26 = ssub.s32 %s21, 1
      %s27 = ssub.s32 %s21, 2
      %s34 = sadd.s32 1, %s29
      %p35 = scmp.ge.s32.totalorder %s34, 2
      %s36 = scalar_select %p35, 0, %s34
      %s37 = sadd.s32 1, %s28
      %s38 = scalar_select %p35, %s37, %s28
      %p39 = scmp.ge.s32.totalorder %s38, 2
      %s40 = scalar_select %p39, 0, %s38
      %s41 = ssub.s32 %s28, %s40
      %s42 = ssub.s32 %s29, %s36
      %s43 = sor.u32 %s41, %s42
      %p44 = scmp.eq.s32.totalorder %s43, 0
      %s46 = sadd.s32 %s45, 1
      %s47 = scalar_select %p44, %s45, %s46
      %p50 = pneg %p44
      %p51 = scmp.eq.s32.totalorder %s21, 3
      %p52 = por %p50, %p51
      %p53 = scmp.ne.s32.totalorder %s45, %s48
      %p54 = scmp.eq.s32.totalorder %s21, 0
      %p55 = por %p53, %p54
      %p56 = scmp.ne.s32.totalorder %s45, %s48
      %p57 = scmp.eq.s32.totalorder %s26, 3
      %p58 = por %p56, %p57
      %p59 = scmp.ne.s32.totalorder %s48, %s49
      %p60 = scmp.eq.s32.totalorder %s26, 0
      %p61 = por %p59, %p60
      %p62 = scmp.ne.s32.totalorder %s48, %s49
      %p63 = scmp.eq.s32.totalorder %s27, 3
      %p64 = por %p62, %p63
      %p66 = scmp.ne.s32.totalorder %s49, %s65
      %p67 = scmp.eq.s32.totalorder %s27, 0
      %p68 = por %p66, %p67
      %s69 = ssub.s32 %s28, %s40
      %s70 = ssub.s32 %s29, %s36
      %s71 = sor.u32 %s69, %s70
      %p72 = scmp.eq.s32.totalorder %s71, 0
      %s74 = sadd.s32 %s73, 1
      %s75 = scalar_select %p72, %s73, %s74
      %p78 = pneg %p72
      %p79 = scmp.eq.s32.totalorder %s21, 3
      %p80 = por %p78, %p79
      %p81 = scmp.ne.s32.totalorder %s73, %s76
      %p82 = scmp.eq.s32.totalorder %s21, 0
      %p83 = por %p81, %p82
      %p84 = scmp.ne.s32.totalorder %s73, %s76
      %p85 = scmp.eq.s32.totalorder %s26, 3
      %p86 = por %p84, %p85
      %p87 = scmp.ne.s32.totalorder %s76, %s77
      %p88 = scmp.eq.s32.totalorder %s26, 0
      %p89 = por %p87, %p88
      %p90 = scmp.ne.s32.totalorder %s76, %s77
      %p91 = scmp.eq.s32.totalorder %s27, 3
      %p92 = por %p90, %p91
      %p94 = scmp.ne.s32.totalorder %s77, %s93
      %p95 = scmp.eq.s32.totalorder %s27, 0
      %p96 = por %p94, %p95
      %s97 = ssub.s32 %s28, %s40
      %s98 = ssub.s32 %s29, %s36
      %s99 = sor.u32 %s97, %s98
      %p100 = scmp.eq.s32.totalorder %s99, 0
      %s102 = sadd.s32 %s101, 1
      %s103 = scalar_select %p100, %s101, %s102
      %p106 = pneg %p100
      %p107 = scmp.eq.s32.totalorder %s21, 3
      %p108 = por %p106, %p107
      %p109 = scmp.ne.s32.totalorder %s101, %s104
      %p110 = scmp.eq.s32.totalorder %s21, 0
      %p111 = por %p109, %p110
      %p112 = scmp.ne.s32.totalorder %s101, %s104
      %p113 = scmp.eq.s32.totalorder %s26, 3
      %p114 = por %p112, %p113
      %p115 = scmp.ne.s32.totalorder %s104, %s105
      %p116 = scmp.eq.s32.totalorder %s26, 0
      %p117 = por %p115, %p116
      %p118 = scmp.ne.s32.totalorder %s104, %s105
      %p119 = scmp.eq.s32.totalorder %s27, 3
      %p120 = por %p118, %p119
      %p122 = scmp.ne.s32.totalorder %s105, %s121
      %p123 = scmp.eq.s32.totalorder %s27, 0
      %p124 = por %p122, %p123
      %s126 = sadd.s32 %s125, 1
      %p129 = scmp.eq.s32.totalorder %s21, 3
      %p130 = scmp.ne.s32.totalorder %s125, %s127
      %p131 = scmp.eq.s32.totalorder %s21, 0
      %p132 = por %p130, %p131
      %p133 = scmp.ne.s32.totalorder %s125, %s127
      %p134 = scmp.eq.s32.totalorder %s26, 3
      %p135 = por %p133, %p134
      %p136 = scmp.ne.s32.totalorder %s127, %s128
      %p137 = scmp.eq.s32.totalorder %s26, 0
      %p138 = por %p136, %p137
      %p139 = scmp.ne.s32.totalorder %s127, %s128
      %p140 = scmp.eq.s32.totalorder %s27, 3
      %p141 = por %p139, %p140
      %p143 = scmp.ne.s32.totalorder %s128, %s142
      %p144 = scmp.eq.s32.totalorder %s27, 0
      %p145 = por %p143, %p144
      %s147 = sadd.s32 %s146, 1
      %p150 = scmp.eq.s32.totalorder %s21, 3
      %p151 = scmp.ne.s32.totalorder %s146, %s148
      %p152 = scmp.eq.s32.totalorder %s21, 0
      %p153 = por %p151, %p152
      %p154 = scmp.ne.s32.totalorder %s146, %s148
      %p155 = scmp.eq.s32.totalorder %s26, 3
      %p156 = por %p154, %p155
      %p157 = scmp.ne.s32.totalorder %s148, %s149
      %p158 = scmp.eq.s32.totalorder %s26, 0
      %p159 = por %p157, %p158
      %p160 = scmp.ne.s32.totalorder %s148, %s149
      %p161 = scmp.eq.s32.totalorder %s27, 3
      %p162 = por %p160, %p161
      %p164 = scmp.ne.s32.totalorder %s149, %s163
      %p165 = scmp.eq.s32.totalorder %s27, 0
      %p166 = por %p164, %p165
      %s168 = sadd.s32 %s167, 1
      %p171 = scmp.eq.s32.totalorder %s21, 3
      %p172 = scmp.ne.s32.totalorder %s167, %s169
      %p173 = scmp.eq.s32.totalorder %s21, 0
      %p174 = por %p172, %p173
      %p175 = scmp.ne.s32.totalorder %s167, %s169
      %p176 = scmp.eq.s32.totalorder %s26, 3
      %p177 = por %p175, %p176
      %p178 = scmp.ne.s32.totalorder %s169, %s170
      %p179 = scmp.eq.s32.totalorder %s26, 0
      %p180 = por %p178, %p179
      %p181 = scmp.ne.s32.totalorder %s169, %s170
      %p182 = scmp.eq.s32.totalorder %s27, 3
      %p183 = por %p181, %p182
      %p185 = scmp.ne.s32.totalorder %s170, %s184
      %p186 = scmp.eq.s32.totalorder %s27, 0
      %p187 = por %p185, %p186
      %s189 = sadd.s32 %s188, 1
      %p192 = scmp.eq.s32.totalorder %s21, 3
      %p193 = scmp.ne.s32.totalorder %s188, %s190
      %p194 = scmp.eq.s32.totalorder %s21, 0
      %p195 = por %p193, %p194
      %p196 = scmp.ne.s32.totalorder %s188, %s190
      %p197 = scmp.eq.s32.totalorder %s26, 3
      %p198 = por %p196, %p197
      %p199 = scmp.ne.s32.totalorder %s190, %s191
      %p200 = scmp.eq.s32.totalorder %s26, 0
      %p201 = por %p199, %p200
      %p202 = scmp.ne.s32.totalorder %s190, %s191
      %p203 = scmp.eq.s32.totalorder %s27, 3
      %p204 = por %p202, %p203
      %p206 = scmp.ne.s32.totalorder %s191, %s205
      %p207 = scmp.eq.s32.totalorder %s27, 0
      %p208 = por %p206, %p207
      %s210 = sadd.s32 %s209, 1
      %p213 = scmp.eq.s32.totalorder %s21, 3
      %p214 = scmp.ne.s32.totalorder %s209, %s211
      %p215 = scmp.eq.s32.totalorder %s21, 0
      %p216 = por %p214, %p215
      %p217 = scmp.ne.s32.totalorder %s209, %s211
      %p218 = scmp.eq.s32.totalorder %s26, 3
      %p219 = por %p217, %p218
      %p220 = scmp.ne.s32.totalorder %s211, %s212
      %p221 = scmp.eq.s32.totalorder %s26, 0
      %p222 = por %p220, %p221
      %p223 = scmp.ne.s32.totalorder %s211, %s212
      %p224 = scmp.eq.s32.totalorder %s27, 3
      %p225 = por %p223, %p224
      %p227 = scmp.ne.s32.totalorder %s212, %s226
      %p228 = scmp.eq.s32.totalorder %s27, 0
      %p229 = por %p227, %p228
      %s231 = sadd.s32 %s230, 1
      %p234 = scmp.eq.s32.totalorder %s21, 3
      %p235 = scmp.ne.s32.totalorder %s230, %s232
      %p236 = scmp.eq.s32.totalorder %s21, 0
      %p237 = por %p235, %p236
      %p238 = scmp.ne.s32.totalorder %s230, %s232
      %p239 = scmp.eq.s32.totalorder %s26, 3
      %p240 = por %p238, %p239
      %p241 = scmp.ne.s32.totalorder %s232, %s233
      %p242 = scmp.eq.s32.totalorder %s26, 0
      %p243 = por %p241, %p242
      %p244 = scmp.ne.s32.totalorder %s232, %s233
      %p245 = scmp.eq.s32.totalorder %s27, 3
      %p246 = por %p244, %p245
      %p248 = scmp.ne.s32.totalorder %s233, %s247
      %p249 = scmp.eq.s32.totalorder %s27, 0
      %p250 = por %p248, %p249
      %s252 = sadd.s32 %s251, 1
      %p255 = scmp.eq.s32.totalorder %s21, 3
      %p256 = scmp.ne.s32.totalorder %s251, %s253
      %p257 = scmp.eq.s32.totalorder %s21, 0
      %p258 = por %p256, %p257
      %p259 = scmp.ne.s32.totalorder %s251, %s253
      %p260 = scmp.eq.s32.totalorder %s26, 3
      %p261 = por %p259, %p260
      %p262 = scmp.ne.s32.totalorder %s253, %s254
      %p263 = scmp.eq.s32.totalorder %s26, 0
      %p264 = por %p262, %p263
      %p265 = scmp.ne.s32.totalorder %s253, %s254
      %p266 = scmp.eq.s32.totalorder %s27, 3
      %p267 = por %p265, %p266
      %p269 = scmp.ne.s32.totalorder %s254, %s268
      %p270 = scmp.eq.s32.totalorder %s27, 0
      %p271 = por %p269, %p270
      %s273 = sadd.s32 %s272, 1
      %p276 = scmp.eq.s32.totalorder %s21, 3
      %p277 = scmp.ne.s32.totalorder %s272, %s274
      %p278 = scmp.eq.s32.totalorder %s21, 0
      %p279 = por %p277, %p278
      %p280 = scmp.ne.s32.totalorder %s272, %s274
      %p281 = scmp.eq.s32.totalorder %s26, 3
      %p282 = por %p280, %p281
      %p283 = scmp.ne.s32.totalorder %s274, %s275
      %p284 = scmp.eq.s32.totalorder %s26, 0
      %p285 = por %p283, %p284
      %p286 = scmp.ne.s32.totalorder %s274, %s275
      %p287 = scmp.eq.s32.totalorder %s27, 3
      %p288 = por %p286, %p287
      %p290 = scmp.ne.s32.totalorder %s275, %s289
      %p291 = scmp.eq.s32.totalorder %s27, 0
      %p292 = por %p290, %p291
      %s294 = sadd.s32 %s293, 1
      %p297 = scmp.eq.s32.totalorder %s21, 3
      %p298 = scmp.ne.s32.totalorder %s293, %s295
      %p299 = scmp.eq.s32.totalorder %s21, 0
      %p300 = por %p298, %p299
      %p301 = scmp.ne.s32.totalorder %s293, %s295
      %p302 = scmp.eq.s32.totalorder %s26, 3
      %p303 = por %p301, %p302
      %p304 = scmp.ne.s32.totalorder %s295, %s296
      %p305 = scmp.eq.s32.totalorder %s26, 0
      %p306 = por %p304, %p305
      %p307 = scmp.ne.s32.totalorder %s295, %s296
      %p308 = scmp.eq.s32.totalorder %s27, 3
      %p309 = por %p307, %p308
      %p311 = scmp.ne.s32.totalorder %s296, %s310
      %p312 = scmp.eq.s32.totalorder %s27, 0
      %p313 = por %p311, %p312
      %s314 = ssub.s32 %s28, %s40
      %s315 = ssub.s32 %s29, %s36
      %s316 = sor.u32 %s314, %s315
      %p317 = scmp.eq.s32.totalorder %s316, 0
      %s319 = sadd.s32 %s318, 1
      %s320 = scalar_select %p317, %s318, %s319
      %p323 = pneg %p317
      %p324 = scmp.eq.s32.totalorder %s21, 3
      %p325 = por %p323, %p324
      %p326 = scmp.ne.s32.totalorder %s318, %s321
      %p327 = scmp.eq.s32.totalorder %s21, 0
      %p328 = por %p326, %p327
      %p329 = scmp.ne.s32.totalorder %s318, %s321
      %p330 = scmp.eq.s32.totalorder %s26, 3
      %p331 = por %p329, %p330
      %p332 = scmp.ne.s32.totalorder %s321, %s322
      %p333 = scmp.eq.s32.totalorder %s26, 0
      %p334 = por %p332, %p333
      %p335 = scmp.ne.s32.totalorder %s321, %s322
      %p336 = scmp.eq.s32.totalorder %s27, 3
      %p337 = por %p335, %p336
      %p339 = scmp.ne.s32.totalorder %s322, %s338
      %p340 = scmp.eq.s32.totalorder %s27, 0
      %p341 = por %p339, %p340
      %p342 = scmp.le.s32.totalorder 1, %s21
      %p343 = scmp.lt.s32.totalorder %s21, 5
      %p344 = pnand %p342, %p343
      %p345 = pneg %p344
      // Predicated region
      $region9: #{tpu_custom_call.1} parent=5 // pred_check
        _
      $region10: #{tpu_custom_call.1} parent=5 // pred_check_branch
        %347 = sbr.rel (%p344) target = $region12
      $region11: #{tpu_custom_call.1} parent=5 // pred_region
        %s348 = ssub.s32 %s21, 1
        // Predicated region
        $region13: #{tpu_custom_call.1} parent=11 // pred_check
          %p349 = pneg %p138
        $region14: #{tpu_custom_call.1} parent=11 // pred_check_branch
          %351 = sbr.rel (%p349) target = $region16
        $region15: #{tpu_custom_call.1} parent=11 // pred_region
          _
        $region16: #{tpu_custom_call.1} parent=11 // pred_fallthru
          _
        // Predicated region
        $region17: #{tpu_custom_call.1} parent=11 // pred_check
          %p352 = pneg %p159
        $region18: #{tpu_custom_call.1} parent=11 // pred_check_branch
          %354 = sbr.rel (%p352) target = $region20
        $region19: #{tpu_custom_call.1} parent=11 // pred_region
          _
        $region20: #{tpu_custom_call.1} parent=11 // pred_fallthru
          _
        // Predicated region
        $region21: #{tpu_custom_call.1} parent=11 // pred_check
          %p355 = pneg %p180
        $region22: #{tpu_custom_call.1} parent=11 // pred_check_branch
          %357 = sbr.rel (%p355) target = $region24
        $region23: #{tpu_custom_call.1} parent=11 // pred_region
          _
        $region24: #{tpu_custom_call.1} parent=11 // pred_fallthru
          _
        // Predicated region
        $region25: #{tpu_custom_call.1} parent=11 // pred_check
          %p358 = pneg %p201
        $region26: #{tpu_custom_call.1} parent=11 // pred_check_branch
          %360 = sbr.rel (%p358) target = $region28
        $region27: #{tpu_custom_call.1} parent=11 // pred_region
          _
        $region28: #{tpu_custom_call.1} parent=11 // pred_fallthru
          _
        // Predicated region
        $region29: #{tpu_custom_call.1} parent=11 // pred_check
          %p361 = pneg %p222
        $region30: #{tpu_custom_call.1} parent=11 // pred_check_branch
          %363 = sbr.rel (%p361) target = $region32
        $region31: #{tpu_custom_call.1} parent=11 // pred_region
          _
        $region32: #{tpu_custom_call.1} parent=11 // pred_fallthru
          _
        // Predicated region
        $region33: #{tpu_custom_call.1} parent=11 // pred_check
          %p364 = pneg %p243
        $region34: #{tpu_custom_call.1} parent=11 // pred_check_branch
          %366 = sbr.rel (%p364) target = $region36
        $region35: #{tpu_custom_call.1} parent=11 // pred_region
          _
        $region36: #{tpu_custom_call.1} parent=11 // pred_fallthru
          _
        // Predicated region
        $region37: #{tpu_custom_call.1} parent=11 // pred_check
          %p367 = pneg %p264
        $region38: #{tpu_custom_call.1} parent=11 // pred_check_branch
          %369 = sbr.rel (%p367) target = $region40
        $region39: #{tpu_custom_call.1} parent=11 // pred_region
          _
        $region40: #{tpu_custom_call.1} parent=11 // pred_fallthru
          _
        // Predicated region
        $region41: #{tpu_custom_call.1} parent=11 // pred_check
          %p370 = pneg %p285
        $region42: #{tpu_custom_call.1} parent=11 // pred_check_branch
          %372 = sbr.rel (%p370) target = $region44
        $region43: #{tpu_custom_call.1} parent=11 // pred_region
          _
        $region44: #{tpu_custom_call.1} parent=11 // pred_fallthru
          _
        // Predicated region
        $region45: #{tpu_custom_call.1} parent=11 // pred_check
          %p373 = pneg %p306
        $region46: #{tpu_custom_call.1} parent=11 // pred_check_branch
          %375 = sbr.rel (%p373) target = $region48
        $region47: #{tpu_custom_call.1} parent=11 // pred_region
          _
        $region48: #{tpu_custom_call.1} parent=11 // pred_fallthru
          _
      $region12: #{tpu_custom_call.1} parent=5 // pred_fallthru
        _
      %p376 = scmp.lt.s32.totalorder %s21, 4
      // Predicated region
      $region49: #{tpu_custom_call.1} parent=5 // pred_check
        %p377 = pneg %p376
      $region50: #{tpu_custom_call.1} parent=5 // pred_check_branch
        %379 = sbr.rel (%p377) target = $region52
      $region51: #{tpu_custom_call.1} parent=5 // pred_region
        // Predicated region
        $region53: #{tpu_custom_call.1} parent=51 // pred_check
          %p380 = pneg %p55
        $region54: #{tpu_custom_call.1} parent=51 // pred_check_branch
          %382 = sbr.rel (%p380) target = $region56
        $region55: #{tpu_custom_call.1} parent=51 // pred_region
          %s383 = sand.u32 %s45, 1
          %s384 = sand.u32 %s45, 1
          %s385 = smul.addr %s384, 64
          %s386 = scalar_lea.vmem [#allocation2], %s385
          %s387 = smul.addr %s28, 16
          %s388 = sadd.s32 %s29, %s387
          %s389 = smul.addr %s388, 8
          %s390 = scalar_lea.vmem %s0, %s389
          // Predicated region
          $region57: #{tpu_custom_call.1} parent=55 // pred_check
            _
          $region58: #{tpu_custom_call.1} parent=55 // pred_check_branch
            %392 = sbr.rel (0) target = $region60
          $region59: #{tpu_custom_call.1} parent=55 // pred_region
            // Predicated region
            $region61: #{tpu_custom_call.1} parent=59 // pred_check
              _
            $region62: #{tpu_custom_call.1} parent=59 // pred_check_branch
              %394 = sbr.rel (0) target = $region64
            $region63: #{tpu_custom_call.1} parent=59 // pred_region
              // Predicated region
              $region76: #{tpu_custom_call.1} parent=63 // pred_check
                _
              $region77: #{tpu_custom_call.1} parent=63 // pred_check_branch
                %424 = sbr.rel (0) target = $region79
              $region78: #{tpu_custom_call.1} parent=63 // pred_region
                loop: start=0, step=1, limit=1
                $region80: #{tpu_custom_call.1} parent=78 // loop_pre_header
                  _
                $region81: #{tpu_custom_call.1} parent=78 // loop_header
                  %s426 = sphi 0, %s430
                  %p427 = scmp.ge.s32.totalorder %s426, 1
                  %s431 = sphi %s390, %s390
                  %s432 = sphi %s386, %s386
                $region82: #{tpu_custom_call.1} parent=78 // loop_header_branch
                  %429 = sbr.rel (%p427) target = $region86
                $region83: #{tpu_custom_call.1} parent=78 // loop_body
                  %v433 = vld [vmem:[%s431] sm:$0xff]
                  %434 = vst [vmem:[%s432] sm:$0xff] %v433
                  %v435 = vld [vmem:[%s431 + $0x10] sm:$0xff]
                  %436 = vst [vmem:[%s432 + $0x8] sm:$0xff] %v435
                  %v437 = vld [vmem:[%s431 + $0x20] sm:$0xff]
                  %438 = vst [vmem:[%s432 + $0x10] sm:$0xff] %v437
                  %v439 = vld [vmem:[%s431 + $0x30] sm:$0xff]
                  %440 = vst [vmem:[%s432 + $0x18] sm:$0xff] %v439
                  %v441 = vld [vmem:[%s431 + $0x40] sm:$0xff]
                  %442 = vst [vmem:[%s432 + $0x20] sm:$0xff] %v441
                  %v443 = vld [vmem:[%s431 + $0x50] sm:$0xff]
                  %444 = vst [vmem:[%s432 + $0x28] sm:$0xff] %v443
                  %v445 = vld [vmem:[%s431 + $0x60] sm:$0xff]
                  %446 = vst [vmem:[%s432 + $0x30] sm:$0xff] %v445
                  %v447 = vld [vmem:[%s431 + $0x70] sm:$0xff]
                  %448 = vst [vmem:[%s432 + $0x38] sm:$0xff] %v447
                $region84: #{tpu_custom_call.1} parent=78 // loop_footer
                  %s430 = sadd.s32 1, %s426
                $region85: #{tpu_custom_call.1} parent=78 // loop_footer_branch
                  %425 = sbr.rel target = $region81
                $region86: #{tpu_custom_call.1} parent=78 // loop_exit
                  _
              $region79: #{tpu_custom_call.1} parent=63 // pred_fallthru
                _
              // Predicated region
              $region87: #{tpu_custom_call.1} parent=63 // pred_check
                _
              $region88: #{tpu_custom_call.1} parent=63 // pred_check_branch
                %450 = sbr.rel target = $region90
              $region89: #{tpu_custom_call.1} parent=63 // pred_region
                _
              $region90: #{tpu_custom_call.1} parent=63 // pred_fallthru
                _
            $region64: #{tpu_custom_call.1} parent=59 // pred_fallthru
              _
            // Predicated region
            $region65: #{tpu_custom_call.1} parent=59 // pred_check
              _
            $region66: #{tpu_custom_call.1} parent=59 // pred_check_branch
              %396 = sbr.rel target = $region68
            $region67: #{tpu_custom_call.1} parent=59 // pred_region
              %s398 = ssub.s32 256, 1
              loop: start=0, step=1, limit=1
              $region69: #{tpu_custom_call.1} parent=67 // loop_pre_header
                _
              $region70: #{tpu_custom_call.1} parent=67 // loop_header
                %s400 = sphi 0, %s404
                %p401 = scmp.ge.s32.totalorder %s400, 1
                %s405 = sphi %s390, %s390
                %s406 = sphi %s386, %s386
              $region71: #{tpu_custom_call.1} parent=67 // loop_header_branch
                %403 = sbr.rel (%p401) target = $region75
              $region72: #{tpu_custom_call.1} parent=67 // loop_body
                %v407 = vld [vmem:[%s405] sm:%s398]
                %408 = vst [vmem:[%s406] sm:%s398] %v407
                %v409 = vld [vmem:[%s405 + $0x10] sm:%s398]
                %410 = vst [vmem:[%s406 + $0x8] sm:%s398] %v409
                %v411 = vld [vmem:[%s405 + $0x20] sm:%s398]
                %412 = vst [vmem:[%s406 + $0x10] sm:%s398] %v411
                %v413 = vld [vmem:[%s405 + $0x30] sm:%s398]
                %414 = vst [vmem:[%s406 + $0x18] sm:%s398] %v413
                %v415 = vld [vmem:[%s405 + $0x40] sm:%s398]
                %416 = vst [vmem:[%s406 + $0x20] sm:%s398] %v415
                %v417 = vld [vmem:[%s405 + $0x50] sm:%s398]
                %418 = vst [vmem:[%s406 + $0x28] sm:%s398] %v417
                %v419 = vld [vmem:[%s405 + $0x60] sm:%s398]
                %420 = vst [vmem:[%s406 + $0x30] sm:%s398] %v419
                %v421 = vld [vmem:[%s405 + $0x70] sm:%s398]
                %422 = vst [vmem:[%s406 + $0x38] sm:%s398] %v421
              $region73: #{tpu_custom_call.1} parent=67 // loop_footer
                %s404 = sadd.s32 1, %s400
              $region74: #{tpu_custom_call.1} parent=67 // loop_footer_branch
                %399 = sbr.rel target = $region70
              $region75: #{tpu_custom_call.1} parent=67 // loop_exit
                _
            $region68: #{tpu_custom_call.1} parent=59 // pred_fallthru
              _
          $region60: #{tpu_custom_call.1} parent=55 // pred_fallthru
            _
          %451 = vnop
        $region56: #{tpu_custom_call.1} parent=51 // pred_fallthru
          _
        // Predicated region
        $region91: #{tpu_custom_call.1} parent=51 // pred_check
          %p452 = pneg %p83
        $region92: #{tpu_custom_call.1} parent=51 // pred_check_branch
          %454 = sbr.rel (%p452) target = $region94
        $region93: #{tpu_custom_call.1} parent=51 // pred_region
          %p455 = scmp.lt.s32.totalorder %s28, 1
          %s456 = scalar_select %p455, %s28, 1
          %p457 = scmp.lt.s32.totalorder %s29, 1
          %s458 = scalar_select %p457, %s29, 1
          %s459 = smul.addr %s458, 8
          %s460 = smul.addr %s456, 16
          %s461 = sadd.s32 %s459, %s460
          %s462 = smul.addr %s461, 8
          %s463 = scalar_lea.vmem %s1, %s462
        $region94: #{tpu_custom_call.1} parent=51 // pred_fallthru
          _
        // Predicated region
        $region95: #{tpu_custom_call.1} parent=51 // pred_check
          %p464 = pneg %p111
        $region96: #{tpu_custom_call.1} parent=51 // pred_check_branch
          %466 = sbr.rel (%p464) target = $region98
        $region97: #{tpu_custom_call.1} parent=51 // pred_region
          %p467 = scmp.lt.s32.totalorder %s28, 1
          %s468 = scalar_select %p467, %s28, 1
          %p469 = scmp.lt.s32.totalorder %s29, 1
          %s470 = scalar_select %p469, %s29, 1
          %s471 = smul.addr %s470, 8
          %s472 = smul.addr %s468, 16
          %s473 = sadd.s32 %s471, %s472
          %s474 = smul.addr %s473, 8
          %s475 = scalar_lea.vmem %s2, %s474
        $region98: #{tpu_custom_call.1} parent=51 // pred_fallthru
          _
      $region52: #{tpu_custom_call.1} parent=5 // pred_fallthru
        _
      %p476 = scmp.le.s32.totalorder 1, %s21
      %p477 = scmp.lt.s32.totalorder %s21, 5
      %p478 = pnand %p476, %p477
      %p479 = pneg %p478
      // Predicated region
      $region99: #{tpu_custom_call.1} parent=5 // pred_check
        _
      $region100: #{tpu_custom_call.1} parent=5 // pred_check_branch
        %481 = sbr.rel (%p478) target = $region102
      $region101: #{tpu_custom_call.1} parent=5 // pred_region
        %s482 = ssub.s32 %s21, 1
        %s483 = sand.u32 %s48, 1
        %s484 = sand.u32 %s48, 1
        %s485 = smul.addr %s484, 64
        %s486 = scalar_lea.vmem [#allocation2], %s485
        // Predicated region
        $region103: #{tpu_custom_call.1} parent=101 // pred_check
          %p487 = pneg %p61
        $region104: #{tpu_custom_call.1} parent=101 // pred_check_branch
          %489 = sbr.rel (%p487) target = $region106
        $region105: #{tpu_custom_call.1} parent=101 // pred_region
          _
        $region106: #{tpu_custom_call.1} parent=101 // pred_fallthru
          _
        %s490 = sand.u32 %s48, 1
        %s491 = sand.u32 %s48, 1
        %s492 = smul.addr %s491, 64
        %s493 = scalar_lea.vmem [#allocation2], %s492
        %p494 = pneg %p61
        %p495 = pneg %p58
        %p496 = scmp.lt.s32.totalorder %s30, 1
        %s497 = scalar_select %p496, %s30, 1
        %p498 = scmp.lt.s32.totalorder %s31, 1
        %s499 = scalar_select %p498, %s31, 1
        %s500 = smul.addr %s499, 8
        %s501 = smul.addr %s497, 16
        %s502 = sadd.s32 %s500, %s501
        %s503 = smul.addr %s502, 8
        %s504 = scalar_lea.vmem %s1, %s503
        %p505 = pneg %p89
        %p506 = pneg %p86
        %p507 = scmp.lt.s32.totalorder %s30, 1
        %s508 = scalar_select %p507, %s30, 1
        %p509 = scmp.lt.s32.totalorder %s31, 1
        %s510 = scalar_select %p509, %s31, 1
        %s511 = smul.addr %s510, 8
        %s512 = smul.addr %s508, 16
        %s513 = sadd.s32 %s511, %s512
        %s514 = smul.addr %s513, 8
        %s515 = scalar_lea.vmem %s2, %s514
        %p516 = pneg %p117
        %p517 = pneg %p114
        %p518 = pneg %p138
        %p519 = pneg %p135
        %p520 = pneg %p159
        %p521 = pneg %p156
        %p522 = pneg %p180
        %p523 = pneg %p177
        %p524 = pneg %p201
        %p525 = pneg %p198
        %p526 = pneg %p222
        %p527 = pneg %p219
        %p528 = pneg %p243
        %p529 = pneg %p240
        %p530 = pneg %p264
        %p531 = pneg %p261
        %p532 = pneg %p285
        %p533 = pneg %p282
        %p534 = pneg %p306
        %p535 = pneg %p303
        %p536 = pneg %p334
        %p537 = pneg %p331
        %s538 = sand.u32 %s321, 1
        %s539 = scalar_lea.sflag [#allocation4], %s538
        %s540 = sand.u32 %s321, 1
        %s541 = smul.addr %s540, 64
        %s542 = scalar_lea.vmem [#allocation3], %s541
        %p543 = scmp.lt.s32.totalorder %s30, 1
        %s544 = scalar_select %p543, %s30, 1
        %p545 = scmp.lt.s32.totalorder %s31, 1
        %s546 = scalar_select %p545, %s31, 1
        %s547 = smul.addr %s546, 8
        %s548 = smul.addr %s544, 16
        %s549 = sadd.s32 %s547, %s548
        %s550 = smul.addr %s549, 8
        %s551 = scalar_lea.vmem %s1, %s550
        %p552 = scmp.lt.s32.totalorder %s30, 1
        %s553 = scalar_select %p552, %s30, 1
        %p554 = scmp.lt.s32.totalorder %s31, 1
        %s555 = scalar_select %p554, %s31, 1
        %s556 = smul.addr %s555, 8
        %s557 = smul.addr %s553, 16
        %s558 = sadd.s32 %s556, %s557
        %s559 = smul.addr %s558, 8
        %s560 = scalar_lea.vmem %s2, %s559
        %p562 = scmp.gt.s32.totalorder %s31, 0
        %s563 = scalar_select %p562, 1, 0
        %s564 = scvt.s32.f32 %s563
        %p565 = scmp.lt.s32.totalorder %s31, 1
        %s566 = scalar_select %p565, 1, 0
        %s567 = scvt.s32.f32 %s566
        %v568 = vld [vmem:[%s486] sm:$0xff]
        %v569 = vld [vmem:[%s486 + $0x8] sm:$0xff]
        %v570 = vld [vmem:[%s486 + $0x10] sm:$0xff]
        %v571 = vld [vmem:[%s486 + $0x18] sm:$0xff]
        %v572 = vld [vmem:[%s486 + $0x20] sm:$0xff]
        %v573 = vld [vmem:[%s486 + $0x28] sm:$0xff]
        %v574 = vld [vmem:[%s486 + $0x30] sm:$0xff]
        %v575 = vld [vmem:[%s486 + $0x38] sm:$0xff]
        %v576 = vpack.c.bf16 %v569, %v568
        %v577 = vpack.c.bf16 %v571, %v570
        %v578 = vpack.c.bf16 %v573, %v572
        %v579 = vpack.c.bf16 %v575, %v574
        %v580 = vld [vmem:[%s551] sm:$0xff]
        %v581 = vld [vmem:[%s551 + $0x8] sm:$0xff]
        %v582 = vld [vmem:[%s551 + $0x10] sm:$0xff]
        %v583 = vld [vmem:[%s551 + $0x18] sm:$0xff]
        %v584 = vld [vmem:[%s551 + $0x20] sm:$0xff]
        %v585 = vld [vmem:[%s551 + $0x28] sm:$0xff]
        %v586 = vld [vmem:[%s551 + $0x30] sm:$0xff]
        %v587 = vld [vmem:[%s551 + $0x38] sm:$0xff]
        %v588 = vpack.c.bf16 %v581, %v580
        %v589 = vpack.c.bf16 %v583, %v582
        %v590 = vpack.c.bf16 %v585, %v584
        %v591 = vpack.c.bf16 %v587, %v586
        %v592 = vld [vmem:[%s560] sm:$0xff]
        %v593 = vld [vmem:[%s560 + $0x8] sm:$0xff]
        %v594 = vld [vmem:[%s560 + $0x10] sm:$0xff]
        %v595 = vld [vmem:[%s560 + $0x18] sm:$0xff]
        %v596 = vld [vmem:[%s560 + $0x20] sm:$0xff]
        %v597 = vld [vmem:[%s560 + $0x28] sm:$0xff]
        %v598 = vld [vmem:[%s560 + $0x30] sm:$0xff]
        %v599 = vld [vmem:[%s560 + $0x38] sm:$0xff]
        %v600 = vpack.c.bf16 %v593, %v592
        %v601 = vpack.c.bf16 %v595, %v594
        %v602 = vpack.c.bf16 %v597, %v596
        %v603 = vpack.c.bf16 %v599, %v598
        %v604 = vld [vmem:[%s3] sm:$0xf]
        %v605 = vld [vmem:[%s3 + $0x4] sm:$0xf]
        %v606 = vld [vmem:[%s4] sm:$0xff]
        %v607 = vld [vmem:[%s4 + $0x8] sm:$0xff]
        %v608 = vld [vmem:[%s5] sm:$0xff]
        %v609 = vld [vmem:[%s5 + $0x8] sm:$0xff]
        %v612 = vunpack.c.l.b16 %v604
        %v613 = vunpack.c.l.b16 %v605
        %v614 = vpack.c.b16 %v613, %v612
        %vm615 = vcmask 523264
        %v617 = vsel %vm615, %v614, 0
        %619 = vmatpush.bf16.msra.mxu0 0
        %620 = vmatpush.bf16.msra.mxu0 0
        %621 = vmatpush.bf16.msra.mxu0 0
        %622 = vmatpush.bf16.msra.mxu0 0
        %623 = vmatpush.bf16.msra.mxu0 %v579
        %624 = vmatpush.bf16.msra.mxu0 %v578
        %625 = vmatpush.bf16.msra.mxu0 %v577
        %626 = vmatpush.bf16.msra.mxu0 %v576
        %627 = vmatmul.bf16.gmra.mxu0 %v617
        %v628 = vpop.f32.mrf.mxu0
        %v629 = vadd.f32 0.0, %v628
        %v630 = vpop.f32.mrf.mxu0
        %v631 = vadd.f32 0.0, %v630
        %632 = vdwg.mxu0
        %634 = vset.pattern.permute.xlu0 0
        %635 = vperm.xlu0 %634, %v606
        %v636 = vpop.permute.xlu0 %635
        %639 = vset.pattern.permute.xlu0 0
        %640 = vperm.xlu0 %639, %v607
        %v641 = vpop.permute.xlu0 %640
        %v643 = vmul.f32 %v629, %v636
        %v644 = vmul.f32 %v631, %v641
        %646 = vset.pattern.permute.xlu0 0
        %647 = vperm.xlu0 %646, %v608
        %v648 = vpop.permute.xlu0 %647
        %651 = vset.pattern.permute.xlu0 0
        %652 = vperm.xlu0 %651, %v609
        %v653 = vpop.permute.xlu0 %652
        %v655 = vadd.f32 %v643, %v648
        %v656 = vadd.f32 %v644, %v653
        %v657 = vmax.f32 %v655, 0.0
        %v658 = vmax.f32 %v656, 0.0
        %659 = vmatpush.bf16.msra.mxu0 0
        %660 = vmatpush.bf16.msra.mxu0 0
        %661 = vmatpush.bf16.msra.mxu0 0
        %662 = vmatpush.bf16.msra.mxu0 0
        %663 = vmatpush.bf16.msra.mxu0 %v591
        %664 = vmatpush.bf16.msra.mxu0 %v590
        %665 = vmatpush.bf16.msra.mxu0 %v589
        %666 = vmatpush.bf16.msra.mxu0 %v588
        %667 = vmatmul.bf16.gmra.mxu0 %v617
        %v668 = vpop.f32.mrf.mxu0
        %v669 = vadd.f32 0.0, %v668
        %v670 = vpop.f32.mrf.mxu0
        %v671 = vadd.f32 0.0, %v670
        %672 = vdwg.mxu0
        %v673 = vmul.f32 %v669, %v636
        %v674 = vmul.f32 %v671, %v641
        %v675 = vadd.f32 %v673, %v648
        %v676 = vadd.f32 %v674, %v653
        %v677 = vmax.f32 %v675, 0.0
        %v678 = vmax.f32 %v676, 0.0
        %v679 = vstv %s564
        %v680 = vmul.f32 %v677, %v679
        %v681 = vmul.f32 %v678, %v679
        %682 = vmatpush.bf16.msra.mxu0 0
        %683 = vmatpush.bf16.msra.mxu0 0
        %684 = vmatpush.bf16.msra.mxu0 0
        %685 = vmatpush.bf16.msra.mxu0 0
        %686 = vmatpush.bf16.msra.mxu0 %v603
        %687 = vmatpush.bf16.msra.mxu0 %v602
        %688 = vmatpush.bf16.msra.mxu0 %v601
        %689 = vmatpush.bf16.msra.mxu0 %v600
        %690 = vmatmul.bf16.gmra.mxu0 %v617
        %v691 = vpop.f32.mrf.mxu0
        %v692 = vadd.f32 0.0, %v691
        %v693 = vpop.f32.mrf.mxu0
        %v694 = vadd.f32 0.0, %v693
        %695 = vdwg.mxu0
        %v696 = vmul.f32 %v692, %v636
        %v697 = vmul.f32 %v694, %v641
        %v698 = vadd.f32 %v696, %v648
        %v699 = vadd.f32 %v697, %v653
        %v700 = vmax.f32 %v698, 0.0
        %v701 = vmax.f32 %v699, 0.0
        %v702 = vstv %s567
        %v703 = vmul.f32 %v700, %v702
        %v704 = vmul.f32 %v701, %v702
        %705 = vxpose.xlu0.b32.start [1/16] %v680, 128
        %706 = vxpose.xlu0.b32.cont [2/16] %v681, 128
        %707 = vxpose.xlu0.b32.cont [3/16] 0.0, 128
        %708 = vxpose.xlu0.b32.cont [4/16] 0.0, 128
        %709 = vxpose.xlu0.b32.cont [5/16] 0.0, 128
        %710 = vxpose.xlu0.b32.cont [6/16] 0.0, 128
        %711 = vxpose.xlu0.b32.cont [7/16] 0.0, 128
        %712 = vxpose.xlu0.b32.cont [8/16] 0.0, 128
        %713 = vxpose.xlu0.b32.cont [9/16] 0.0, 128
        %714 = vxpose.xlu0.b32.cont [10/16] 0.0, 128
        %715 = vxpose.xlu0.b32.cont [11/16] 0.0, 128
        %716 = vxpose.xlu0.b32.cont [12/16] 0.0, 128
        %717 = vxpose.xlu0.b32.cont [13/16] 0.0, 128
        %718 = vxpose.xlu0.b32.cont [14/16] 0.0, 128
        %719 = vxpose.xlu0.b32.cont [15/16] 0.0, 128
        %720 = vxpose.xlu0.b32.end [16/16] 0.0, 128
        %v721 = vpop.trf.xlu0
        %v722 = vpop.trf.xlu0
        %v723 = vpop.trf.xlu0
        %v724 = vpop.trf.xlu0
        %v725 = vpop.trf.xlu0
        %v726 = vpop.trf.xlu0
        %v727 = vpop.trf.xlu0
        %v728 = vpop.trf.xlu0
        %v729 = vpop.trf.xlu0
        %v730 = vpop.trf.xlu0
        %v731 = vpop.trf.xlu0
        %v732 = vpop.trf.xlu0
        %v733 = vpop.trf.xlu0
        %v734 = vpop.trf.xlu0
        %v735 = vpop.trf.xlu0
        %v736 = vpop.trf.xlu0
        %v737 = vpack.c.bf16 %v721, %v721
        %v738 = vpack.c.bf16 %v722, %v722
        %739 = vxpose.xlu0.b32.start [1/16] %v657, 128
        %740 = vxpose.xlu0.b32.cont [2/16] %v658, 128
        %741 = vxpose.xlu0.b32.cont [3/16] 0.0, 128
        %742 = vxpose.xlu0.b32.cont [4/16] 0.0, 128
        %743 = vxpose.xlu0.b32.cont [5/16] 0.0, 128
        %744 = vxpose.xlu0.b32.cont [6/16] 0.0, 128
        %745 = vxpose.xlu0.b32.cont [7/16] 0.0, 128
        %746 = vxpose.xlu0.b32.cont [8/16] 0.0, 128
        %747 = vxpose.xlu0.b32.cont [9/16] 0.0, 128
        %748 = vxpose.xlu0.b32.cont [10/16] 0.0, 128
        %749 = vxpose.xlu0.b32.cont [11/16] 0.0, 128
        %750 = vxpose.xlu0.b32.cont [12/16] 0.0, 128
        %751 = vxpose.xlu0.b32.cont [13/16] 0.0, 128
        %752 = vxpose.xlu0.b32.cont [14/16] 0.0, 128
        %753 = vxpose.xlu0.b32.cont [15/16] 0.0, 128
        %754 = vxpose.xlu0.b32.end [16/16] 0.0, 128
        %v755 = vpop.trf.xlu0
        %v756 = vpop.trf.xlu0
        %v757 = vpop.trf.xlu0
        %v758 = vpop.trf.xlu0
        %v759 = vpop.trf.xlu0
        %v760 = vpop.trf.xlu0
        %v761 = vpop.trf.xlu0
        %v762 = vpop.trf.xlu0
        %v763 = vpop.trf.xlu0
        %v764 = vpop.trf.xlu0
        %v765 = vpop.trf.xlu0
        %v766 = vpop.trf.xlu0
        %v767 = vpop.trf.xlu0
        %v768 = vpop.trf.xlu0
        %v769 = vpop.trf.xlu0
        %v770 = vpop.trf.xlu0
        %v771 = vpack.c.bf16 %v755, %v755
        %v772 = vpack.c.bf16 %v756, %v756
        %v773 = vpack.c.bf16 %v757, %v757
        %v774 = vpack.c.bf16 %v758, %v758
        %v775 = vpack.c.bf16 %v759, %v759
        %v776 = vpack.c.bf16 %v760, %v760
        %v777 = vpack.c.bf16 %v761, %v761
        %v778 = vpack.c.bf16 %v762, %v762
        %v779 = vpack.c.bf16 %v763, %v763
        %v780 = vpack.c.bf16 %v764, %v764
        %v781 = vpack.c.bf16 %v765, %v765
        %v782 = vpack.c.bf16 %v766, %v766
        %v783 = vpack.c.bf16 %v767, %v767
        %v784 = vpack.c.bf16 %v768, %v768
        %v785 = vpack.c.bf16 %v769, %v769
        %v786 = vpack.c.bf16 %v770, %v770
        %787 = vxpose.xlu0.b32.start [1/16] %v703, 128
        %788 = vxpose.xlu0.b32.cont [2/16] %v704, 128
        %789 = vxpose.xlu0.b32.cont [3/16] 0.0, 128
        %790 = vxpose.xlu0.b32.cont [4/16] 0.0, 128
        %791 = vxpose.xlu0.b32.cont [5/16] 0.0, 128
        %792 = vxpose.xlu0.b32.cont [6/16] 0.0, 128
        %793 = vxpose.xlu0.b32.cont [7/16] 0.0, 128
        %794 = vxpose.xlu0.b32.cont [8/16] 0.0, 128
        %795 = vxpose.xlu0.b32.cont [9/16] 0.0, 128
        %796 = vxpose.xlu0.b32.cont [10/16] 0.0, 128
        %797 = vxpose.xlu0.b32.cont [11/16] 0.0, 128
        %798 = vxpose.xlu0.b32.cont [12/16] 0.0, 128
        %799 = vxpose.xlu0.b32.cont [13/16] 0.0, 128
        %800 = vxpose.xlu0.b32.cont [14/16] 0.0, 128
        %801 = vxpose.xlu0.b32.cont [15/16] 0.0, 128
        %802 = vxpose.xlu0.b32.end [16/16] 0.0, 128
        %v803 = vpop.trf.xlu0
        %v804 = vpop.trf.xlu0
        %v805 = vpop.trf.xlu0
        %v806 = vpop.trf.xlu0
        %v807 = vpop.trf.xlu0
        %v808 = vpop.trf.xlu0
        %v809 = vpop.trf.xlu0
        %v810 = vpop.trf.xlu0
        %v811 = vpop.trf.xlu0
        %v812 = vpop.trf.xlu0
        %v813 = vpop.trf.xlu0
        %v814 = vpop.trf.xlu0
        %v815 = vpop.trf.xlu0
        %v816 = vpop.trf.xlu0
        %v817 = vpop.trf.xlu0
        %v818 = vpop.trf.xlu0
        %v819 = vpack.c.bf16 %v803, %v803
        %v820 = vpack.c.bf16 %v804, %v804
        %v823 = vunpack.c.l.b16 %v737
        %v824 = vunpack.c.l.b16 %v738
        %v825 = vpack.c.b16 %v824, %v823
        %v842 = vunpack.c.l.b16 %v771
        %v843 = vunpack.c.l.b16 %v772
        %v844 = vunpack.c.l.b16 %v773
        %v845 = vunpack.c.l.b16 %v774
        %v846 = vunpack.c.l.b16 %v775
        %v847 = vunpack.c.l.b16 %v776
        %v848 = vunpack.c.l.b16 %v777
        %v849 = vunpack.c.l.b16 %v778
        %v850 = vunpack.c.l.b16 %v779
        %v851 = vunpack.c.l.b16 %v780
        %v852 = vunpack.c.l.b16 %v781
        %v853 = vunpack.c.l.b16 %v782
        %v854 = vunpack.c.l.b16 %v783
        %v855 = vunpack.c.l.b16 %v784
        %v856 = vunpack.c.l.b16 %v785
        %v857 = vunpack.c.l.b16 %v786
        %v858 = vpack.c.b16 %v843, %v842
        %v859 = vpack.c.b16 %v845, %v844
        %v860 = vpack.c.b16 %v847, %v846
        %v861 = vpack.c.b16 %v849, %v848
        %v862 = vpack.c.b16 %v851, %v850
        %v863 = vpack.c.b16 %v853, %v852
        %v864 = vpack.c.b16 %v855, %v854
        %v865 = vpack.c.b16 %v857, %v856
        %v868 = vunpack.c.l.b16 %v819
        %v869 = vunpack.c.l.b16 %v820
        %v870 = vpack.c.b16 %v869, %v868
        %v871 = vlaneseq
        %v872 = vshrl.u32 %v871, 7
        %v873 = vadd.s32 %v872, 8
        %v874 = vadd.s32 %v872, 16
        %v875 = vadd.s32 %v872, 24
        %v876 = vadd.s32 %v872, 32
        %v877 = vadd.s32 %v872, 40
        %v878 = vadd.s32 %v872, 48
        %v879 = vadd.s32 %v872, 56
        %v880 = vadd.s32 %v872, 64
        %v881 = vadd.s32 %v872, 72
        %v882 = vadd.s32 %v872, 80
        %v883 = vadd.s32 %v872, 88
        %v884 = vadd.s32 %v872, 96
        %v885 = vadd.s32 %v872, 104
        %v886 = vadd.s32 %v872, 112
        %v887 = vadd.s32 %v872, 120
        %v888 = vadd.s32 %v872, 128
        %v889 = vadd.s32 %v872, 136
        %v890 = vadd.s32 %v872, 144
        %v891 = vadd.s32 %v872, 152
        %vm892 = vcmp.lt.s32.totalorder %v872, 0
        %v893 = vsub.s32 0, %v872
        %v894 = vsel %vm892, %v893, %v872
        %v895 = vshrl.u32 %v894, 4
        %v896 = vand.u32 %v894, 15
        %v897 = vsub.s32 0, %v896
        %v898 = vsel %vm892, %v897, %v896
        %vm899 = vcmp.lt.s32.totalorder %v873, 0
        %v900 = vsub.s32 0, %v873
        %v901 = vsel %vm899, %v900, %v873
        %v902 = vshrl.u32 %v901, 4
        %v903 = vand.u32 %v901, 15
        %v904 = vsub.s32 0, %v903
        %v905 = vsel %vm899, %v904, %v903
        %vm906 = vcmp.lt.s32.totalorder %v874, 0
        %v907 = vsub.s32 0, %v874
        %v908 = vsel %vm906, %v907, %v874
        %v909 = vshrl.u32 %v908, 4
        %v910 = vand.u32 %v908, 15
        %v911 = vsub.s32 0, %v910
        %v912 = vsel %vm906, %v911, %v910
        %vm913 = vcmp.lt.s32.totalorder %v875, 0
        %v914 = vsub.s32 0, %v875
        %v915 = vsel %vm913, %v914, %v875
        %v916 = vshrl.u32 %v915, 4
        %v917 = vand.u32 %v915, 15
        %v918 = vsub.s32 0, %v917
        %v919 = vsel %vm913, %v918, %v917
        %vm920 = vcmp.lt.s32.totalorder %v876, 0
        %v921 = vsub.s32 0, %v876
        %v922 = vsel %vm920, %v921, %v876
        %v923 = vshrl.u32 %v922, 4
        %v924 = vand.u32 %v922, 15
        %v925 = vsub.s32 0, %v924
        %v926 = vsel %vm920, %v925, %v924
        %vm927 = vcmp.lt.s32.totalorder %v877, 0
        %v928 = vsub.s32 0, %v877
        %v929 = vsel %vm927, %v928, %v877
        %v930 = vshrl.u32 %v929, 4
        %v931 = vand.u32 %v929, 15
        %v932 = vsub.s32 0, %v931
        %v933 = vsel %vm927, %v932, %v931
        %vm934 = vcmp.lt.s32.totalorder %v878, 0
        %v935 = vsub.s32 0, %v878
        %v936 = vsel %vm934, %v935, %v878
        %v937 = vshrl.u32 %v936, 4
        %v938 = vand.u32 %v936, 15
        %v939 = vsub.s32 0, %v938
        %v940 = vsel %vm934, %v939, %v938
        %vm941 = vcmp.lt.s32.totalorder %v879, 0
        %v942 = vsub.s32 0, %v879
        %v943 = vsel %vm941, %v942, %v879
        %v944 = vshrl.u32 %v943, 4
        %v945 = vand.u32 %v943, 15
        %v946 = vsub.s32 0, %v945
        %v947 = vsel %vm941, %v946, %v945
        %vm948 = vcmp.lt.s32.totalorder %v880, 0
        %v949 = vsub.s32 0, %v880
        %v950 = vsel %vm948, %v949, %v880
        %v951 = vshrl.u32 %v950, 4
        %v952 = vand.u32 %v950, 15
        %v953 = vsub.s32 0, %v952
        %v954 = vsel %vm948, %v953, %v952
        %vm955 = vcmp.lt.s32.totalorder %v881, 0
        %v956 = vsub.s32 0, %v881
        %v957 = vsel %vm955, %v956, %v881
        %v958 = vshrl.u32 %v957, 4
        %v959 = vand.u32 %v957, 15
        %v960 = vsub.s32 0, %v959
        %v961 = vsel %vm955, %v960, %v959
        %vm962 = vcmp.lt.s32.totalorder %v882, 0
        %v963 = vsub.s32 0, %v882
        %v964 = vsel %vm962, %v963, %v882
        %v965 = vshrl.u32 %v964, 4
        %v966 = vand.u32 %v964, 15
        %v967 = vsub.s32 0, %v966
        %v968 = vsel %vm962, %v967, %v966
        %vm969 = vcmp.lt.s32.totalorder %v883, 0
        %v970 = vsub.s32 0, %v883
        %v971 = vsel %vm969, %v970, %v883
        %v972 = vshrl.u32 %v971, 4
        %v973 = vand.u32 %v971, 15
        %v974 = vsub.s32 0, %v973
        %v975 = vsel %vm969, %v974, %v973
        %vm976 = vcmp.lt.s32.totalorder %v884, 0
        %v977 = vsub.s32 0, %v884
        %v978 = vsel %vm976, %v977, %v884
        %v979 = vshrl.u32 %v978, 4
        %v980 = vand.u32 %v978, 15
        %v981 = vsub.s32 0, %v980
        %v982 = vsel %vm976, %v981, %v980
        %vm983 = vcmp.lt.s32.totalorder %v885, 0
        %v984 = vsub.s32 0, %v885
        %v985 = vsel %vm983, %v984, %v885
        %v986 = vshrl.u32 %v985, 4
        %v987 = vand.u32 %v985, 15
        %v988 = vsub.s32 0, %v987
        %v989 = vsel %vm983, %v988, %v987
        %vm990 = vcmp.lt.s32.totalorder %v886, 0
        %v991 = vsub.s32 0, %v886
        %v992 = vsel %vm990, %v991, %v886
        %v993 = vshrl.u32 %v992, 4
        %v994 = vand.u32 %v992, 15
        %v995 = vsub.s32 0, %v994
        %v996 = vsel %vm990, %v995, %v994
        %vm997 = vcmp.lt.s32.totalorder %v887, 0
        %v998 = vsub.s32 0, %v887
        %v999 = vsel %vm997, %v998, %v887
        %v1000 = vshrl.u32 %v999, 4
        %v1001 = vand.u32 %v999, 15
        %v1002 = vsub.s32 0, %v1001
        %v1003 = vsel %vm997, %v1002, %v1001
        %vm1004 = vcmp.lt.s32.totalorder %v888, 0
        %v1005 = vsub.s32 0, %v888
        %v1006 = vsel %vm1004, %v1005, %v888
        %v1007 = vshrl.u32 %v1006, 4
        %v1008 = vand.u32 %v1006, 15
        %v1009 = vsub.s32 0, %v1008
        %v1010 = vsel %vm1004, %v1009, %v1008
        %vm1011 = vcmp.lt.s32.totalorder %v889, 0
        %v1012 = vsub.s32 0, %v889
        %v1013 = vsel %vm1011, %v1012, %v889
        %v1014 = vshrl.u32 %v1013, 4
        %v1015 = vand.u32 %v1013, 15
        %v1016 = vsub.s32 0, %v1015
        %v1017 = vsel %vm1011, %v1016, %v1015
        %vm1018 = vcmp.lt.s32.totalorder %v890, 0
        %v1019 = vsub.s32 0, %v890
        %v1020 = vsel %vm1018, %v1019, %v890
        %v1021 = vshrl.u32 %v1020, 4
        %v1022 = vand.u32 %v1020, 15
        %v1023 = vsub.s32 0, %v1022
        %v1024 = vsel %vm1018, %v1023, %v1022
        %vm1025 = vcmp.lt.s32.totalorder %v891, 0
        %v1026 = vsub.s32 0, %v891
        %v1027 = vsel %vm1025, %v1026, %v891
        %v1028 = vshrl.u32 %v1027, 4
        %v1029 = vand.u32 %v1027, 15
        %v1030 = vsub.s32 0, %v1029
        %v1031 = vsel %vm1025, %v1030, %v1029
        %vm1032 = vcmp.ne.s32.totalorder %v898, 0
        %vm1033 = vcmp.ne.s32.totalorder %v905, 0
        %vm1034 = vcmp.ne.s32.totalorder %v912, 0
        %vm1035 = vcmp.ne.s32.totalorder %v919, 0
        %vm1036 = vcmp.ne.s32.totalorder %v926, 0
        %vm1037 = vcmp.ne.s32.totalorder %v933, 0
        %vm1038 = vcmp.ne.s32.totalorder %v940, 0
        %vm1039 = vcmp.ne.s32.totalorder %v947, 0
        %vm1040 = vcmp.ne.s32.totalorder %v954, 0
        %vm1041 = vcmp.ne.s32.totalorder %v961, 0
        %vm1042 = vcmp.ne.s32.totalorder %v968, 0
        %vm1043 = vcmp.ne.s32.totalorder %v975, 0
        %vm1044 = vcmp.ne.s32.totalorder %v982, 0
        %vm1045 = vcmp.ne.s32.totalorder %v989, 0
        %vm1046 = vcmp.ne.s32.totalorder %v996, 0
        %vm1047 = vcmp.ne.s32.totalorder %v1003, 0
        %vm1048 = vcmp.ne.s32.totalorder %v1010, 0
        %vm1049 = vcmp.ne.s32.totalorder %v1017, 0
        %vm1050 = vcmp.ne.s32.totalorder %v1024, 0
        %vm1051 = vcmp.ne.s32.totalorder %v1031, 0
        %vm1052 = vcmp.lt.s32.totalorder %v898, 0
        %vm1053 = vcmp.lt.s32.totalorder %v905, 0
        %vm1054 = vcmp.lt.s32.totalorder %v912, 0
        %vm1055 = vcmp.lt.s32.totalorder %v919, 0
        %vm1056 = vcmp.lt.s32.totalorder %v926, 0
        %vm1057 = vcmp.lt.s32.totalorder %v933, 0
        %vm1058 = vcmp.lt.s32.totalorder %v940, 0
        %vm1059 = vcmp.lt.s32.totalorder %v947, 0
        %vm1060 = vcmp.lt.s32.totalorder %v954, 0
        %vm1061 = vcmp.lt.s32.totalorder %v961, 0
        %vm1062 = vcmp.lt.s32.totalorder %v968, 0
        %vm1063 = vcmp.lt.s32.totalorder %v975, 0
        %vm1064 = vcmp.lt.s32.totalorder %v982, 0
        %vm1065 = vcmp.lt.s32.totalorder %v989, 0
        %vm1066 = vcmp.lt.s32.totalorder %v996, 0
        %vm1067 = vcmp.lt.s32.totalorder %v1003, 0
        %vm1068 = vcmp.lt.s32.totalorder %v1010, 0
        %vm1069 = vcmp.lt.s32.totalorder %v1017, 0
        %vm1070 = vcmp.lt.s32.totalorder %v1024, 0
        %vm1071 = vcmp.lt.s32.totalorder %v1031, 0
        %vm1072 = vmand %vm1052, %vm1032
        %vm1073 = vmand %vm1053, %vm1033
        %vm1074 = vmand %vm1054, %vm1034
        %vm1075 = vmand %vm1055, %vm1035
        %vm1076 = vmand %vm1056, %vm1036
        %vm1077 = vmand %vm1057, %vm1037
        %vm1078 = vmand %vm1058, %vm1038
        %vm1079 = vmand %vm1059, %vm1039
        %vm1080 = vmand %vm1060, %vm1040
        %vm1081 = vmand %vm1061, %vm1041
        %vm1082 = vmand %vm1062, %vm1042
        %vm1083 = vmand %vm1063, %vm1043
        %vm1084 = vmand %vm1064, %vm1044
        %vm1085 = vmand %vm1065, %vm1045
        %vm1086 = vmand %vm1066, %vm1046
        %vm1087 = vmand %vm1067, %vm1047
        %vm1088 = vmand %vm1068, %vm1048
        %vm1089 = vmand %vm1069, %vm1049
        %vm1090 = vmand %vm1070, %vm1050
        %vm1091 = vmand %vm1071, %vm1051
        %v1092 = vadd.s32 %v898, 16
        %v1093 = vadd.s32 %v905, 16
        %v1094 = vadd.s32 %v912, 16
        %v1095 = vadd.s32 %v919, 16
        %v1096 = vadd.s32 %v926, 16
        %v1097 = vadd.s32 %v933, 16
        %v1098 = vadd.s32 %v940, 16
        %v1099 = vadd.s32 %v947, 16
        %v1100 = vadd.s32 %v954, 16
        %v1101 = vadd.s32 %v961, 16
        %v1102 = vadd.s32 %v968, 16
        %v1103 = vadd.s32 %v975, 16
        %v1104 = vadd.s32 %v982, 16
        %v1105 = vadd.s32 %v989, 16
        %v1106 = vadd.s32 %v996, 16
        %v1107 = vadd.s32 %v1003, 16
        %v1108 = vadd.s32 %v1010, 16
        %v1109 = vadd.s32 %v1017, 16
        %v1110 = vadd.s32 %v1024, 16
        %v1111 = vadd.s32 %v1031, 16
        %v1112 = vsel %vm1072, %v1092, %v898
        %v1113 = vsel %vm1073, %v1093, %v905
        %v1114 = vsel %vm1074, %v1094, %v912
        %v1115 = vsel %vm1075, %v1095, %v919
        %v1116 = vsel %vm1076, %v1096, %v926
        %v1117 = vsel %vm1077, %v1097, %v933
        %v1118 = vsel %vm1078, %v1098, %v940
        %v1119 = vsel %vm1079, %v1099, %v947
        %v1120 = vsel %vm1080, %v1100, %v954
        %v1121 = vsel %vm1081, %v1101, %v961
        %v1122 = vsel %vm1082, %v1102, %v968
        %v1123 = vsel %vm1083, %v1103, %v975
        %v1124 = vsel %vm1084, %v1104, %v982
        %v1125 = vsel %vm1085, %v1105, %v989
        %v1126 = vsel %vm1086, %v1106, %v996
        %v1127 = vsel %vm1087, %v1107, %v1003
        %v1128 = vsel %vm1088, %v1108, %v1010
        %v1129 = vsel %vm1089, %v1109, %v1017
        %v1130 = vsel %vm1090, %v1110, %v1024
        %v1131 = vsel %vm1091, %v1111, %v1031
        %vm1132 = vcmp.ne.s32.totalorder %v1112, 0
        %vm1133 = vcmp.ne.s32.totalorder %v1113, 0
        %vm1134 = vcmp.ne.s32.totalorder %v1114, 0
        %vm1135 = vcmp.ne.s32.totalorder %v1115, 0
        %vm1136 = vcmp.ne.s32.totalorder %v1116, 0
        %vm1137 = vcmp.ne.s32.totalorder %v1117, 0
        %vm1138 = vcmp.ne.s32.totalorder %v1118, 0
        %vm1139 = vcmp.ne.s32.totalorder %v1119, 0
        %vm1140 = vcmp.ne.s32.totalorder %v1120, 0
        %vm1141 = vcmp.ne.s32.totalorder %v1121, 0
        %vm1142 = vcmp.ne.s32.totalorder %v1122, 0
        %vm1143 = vcmp.ne.s32.totalorder %v1123, 0
        %vm1144 = vcmp.ne.s32.totalorder %v1124, 0
        %vm1145 = vcmp.ne.s32.totalorder %v1125, 0
        %vm1146 = vcmp.ne.s32.totalorder %v1126, 0
        %vm1147 = vcmp.ne.s32.totalorder %v1127, 0
        %vm1148 = vcmp.ne.s32.totalorder %v1128, 0
        %vm1149 = vcmp.ne.s32.totalorder %v1129, 0
        %vm1150 = vcmp.ne.s32.totalorder %v1130, 0
        %vm1151 = vcmp.ne.s32.totalorder %v1131, 0
        %v1152 = vsel %vm1132, 1, 0
        %v1153 = vsel %vm1133, 1, 0
        %v1154 = vsel %vm1134, 1, 0
        %v1155 = vsel %vm1135, 1, 0
        %v1156 = vsel %vm1136, 1, 0
        %v1157 = vsel %vm1137, 1, 0
        %v1158 = vsel %vm1138, 1, 0
        %v1159 = vsel %vm1139, 1, 0
        %v1160 = vsel %vm1140, 1, 0
        %v1161 = vsel %vm1141, 1, 0
        %v1162 = vsel %vm1142, 1, 0
        %v1163 = vsel %vm1143, 1, 0
        %v1164 = vsel %vm1144, 1, 0
        %v1165 = vsel %vm1145, 1, 0
        %v1166 = vsel %vm1146, 1, 0
        %v1167 = vsel %vm1147, 1, 0
        %v1168 = vsel %vm1148, 1, 0
        %v1169 = vsel %vm1149, 1, 0
        %v1170 = vsel %vm1150, 1, 0
        %v1171 = vsel %vm1151, 1, 0
        %v1172 = vcvt.s32.f32 %v1152
        %v1173 = vcvt.s32.f32 %v1153
        %v1174 = vcvt.s32.f32 %v1154
        %v1175 = vcvt.s32.f32 %v1155
        %v1176 = vcvt.s32.f32 %v1156
        %v1177 = vcvt.s32.f32 %v1157
        %v1178 = vcvt.s32.f32 %v1158
        %v1179 = vcvt.s32.f32 %v1159
        %v1180 = vcvt.s32.f32 %v1160
        %v1181 = vcvt.s32.f32 %v1161
        %v1182 = vcvt.s32.f32 %v1162
        %v1183 = vcvt.s32.f32 %v1163
        %v1184 = vcvt.s32.f32 %v1164
        %v1185 = vcvt.s32.f32 %v1165
        %v1186 = vcvt.s32.f32 %v1166
        %v1187 = vcvt.s32.f32 %v1167
        %v1188 = vcvt.s32.f32 %v1168
        %v1189 = vcvt.s32.f32 %v1169
        %v1190 = vcvt.s32.f32 %v1170
        %v1191 = vcvt.s32.f32 %v1171
        %v1192 = vpack.c.bf16 %v1172, %v1172
        %v1193 = vpack.c.bf16 %v1173, %v1173
        %v1194 = vpack.c.bf16 %v1174, %v1174
        %v1195 = vpack.c.bf16 %v1175, %v1175
        %v1196 = vpack.c.bf16 %v1176, %v1176
        %v1197 = vpack.c.bf16 %v1177, %v1177
        %v1198 = vpack.c.bf16 %v1178, %v1178
        %v1199 = vpack.c.bf16 %v1179, %v1179
        %v1200 = vpack.c.bf16 %v1180, %v1180
        %v1201 = vpack.c.bf16 %v1181, %v1181
        %v1202 = vpack.c.bf16 %v1182, %v1182
        %v1203 = vpack.c.bf16 %v1183, %v1183
        %v1204 = vpack.c.bf16 %v1184, %v1184
        %v1205 = vpack.c.bf16 %v1185, %v1185
        %v1206 = vpack.c.bf16 %v1186, %v1186
        %v1207 = vpack.c.bf16 %v1187, %v1187
        %v1208 = vpack.c.bf16 %v1188, %v1188
        %v1209 = vpack.c.bf16 %v1189, %v1189
        %v1210 = vpack.c.bf16 %v1190, %v1190
        %v1211 = vpack.c.bf16 %v1191, %v1191
        %vm1212 = vcmp.ne.s32.totalorder %v1112, 15
        %vm1213 = vcmp.ne.s32.totalorder %v1113, 15
        %vm1214 = vcmp.ne.s32.totalorder %v1114, 15
        %vm1215 = vcmp.ne.s32.totalorder %v1115, 15
        %vm1216 = vcmp.ne.s32.totalorder %v1116, 15
        %vm1217 = vcmp.ne.s32.totalorder %v1117, 15
        %vm1218 = vcmp.ne.s32.totalorder %v1118, 15
        %vm1219 = vcmp.ne.s32.totalorder %v1119, 15
        %vm1220 = vcmp.ne.s32.totalorder %v1120, 15
        %vm1221 = vcmp.ne.s32.totalorder %v1121, 15
        %vm1222 = vcmp.ne.s32.totalorder %v1122, 15
        %vm1223 = vcmp.ne.s32.totalorder %v1123, 15
        %vm1224 = vcmp.ne.s32.totalorder %v1124, 15
        %vm1225 = vcmp.ne.s32.totalorder %v1125, 15
        %vm1226 = vcmp.ne.s32.totalorder %v1126, 15
        %vm1227 = vcmp.ne.s32.totalorder %v1127, 15
        %vm1228 = vcmp.ne.s32.totalorder %v1128, 15
        %vm1229 = vcmp.ne.s32.totalorder %v1129, 15
        %vm1230 = vcmp.ne.s32.totalorder %v1130, 15
        %vm1231 = vcmp.ne.s32.totalorder %v1131, 15
        %v1232 = vsel %vm1212, 1, 0
        %v1233 = vsel %vm1213, 1, 0
        %v1234 = vsel %vm1214, 1, 0
        %v1235 = vsel %vm1215, 1, 0
        %v1236 = vsel %vm1216, 1, 0
        %v1237 = vsel %vm1217, 1, 0
        %v1238 = vsel %vm1218, 1, 0
        %v1239 = vsel %vm1219, 1, 0
        %v1240 = vsel %vm1220, 1, 0
        %v1241 = vsel %vm1221, 1, 0
        %v1242 = vsel %vm1222, 1, 0
        %v1243 = vsel %vm1223, 1, 0
        %v1244 = vsel %vm1224, 1, 0
        %v1245 = vsel %vm1225, 1, 0
        %v1246 = vsel %vm1226, 1, 0
        %v1247 = vsel %vm1227, 1, 0
        %v1248 = vsel %vm1228, 1, 0
        %v1249 = vsel %vm1229, 1, 0
        %v1250 = vsel %vm1230, 1, 0
        %v1251 = vsel %vm1231, 1, 0
        %v1252 = vcvt.s32.f32 %v1232
        %v1253 = vcvt.s32.f32 %v1233
        %v1254 = vcvt.s32.f32 %v1234
        %v1255 = vcvt.s32.f32 %v1235
        %v1256 = vcvt.s32.f32 %v1236
        %v1257 = vcvt.s32.f32 %v1237
        %v1258 = vcvt.s32.f32 %v1238
        %v1259 = vcvt.s32.f32 %v1239
        %v1260 = vcvt.s32.f32 %v1240
        %v1261 = vcvt.s32.f32 %v1241
        %v1262 = vcvt.s32.f32 %v1242
        %v1263 = vcvt.s32.f32 %v1243
        %v1264 = vcvt.s32.f32 %v1244
        %v1265 = vcvt.s32.f32 %v1245
        %v1266 = vcvt.s32.f32 %v1246
        %v1267 = vcvt.s32.f32 %v1247
        %v1268 = vcvt.s32.f32 %v1248
        %v1269 = vcvt.s32.f32 %v1249
        %v1270 = vcvt.s32.f32 %v1250
        %v1271 = vcvt.s32.f32 %v1251
        %v1272 = vpack.c.bf16 %v1252, %v1252
        %v1273 = vpack.c.bf16 %v1253, %v1253
        %v1274 = vpack.c.bf16 %v1254, %v1254
        %v1275 = vpack.c.bf16 %v1255, %v1255
        %v1276 = vpack.c.bf16 %v1256, %v1256
        %v1277 = vpack.c.bf16 %v1257, %v1257
        %v1278 = vpack.c.bf16 %v1258, %v1258
        %v1279 = vpack.c.bf16 %v1259, %v1259
        %v1280 = vpack.c.bf16 %v1260, %v1260
        %v1281 = vpack.c.bf16 %v1261, %v1261
        %v1282 = vpack.c.bf16 %v1262, %v1262
        %v1283 = vpack.c.bf16 %v1263, %v1263
        %v1284 = vpack.c.bf16 %v1264, %v1264
        %v1285 = vpack.c.bf16 %v1265, %v1265
        %v1286 = vpack.c.bf16 %v1266, %v1266
        %v1287 = vpack.c.bf16 %v1267, %v1267
        %v1288 = vpack.c.bf16 %v1268, %v1268
        %v1289 = vpack.c.bf16 %v1269, %v1269
        %v1290 = vpack.c.bf16 %v1270, %v1270
        %v1291 = vpack.c.bf16 %v1271, %v1271
        %vm1292 = vsmask.f32 256
        %v1294 = vshrl.u32 %v825, 16
        %v1296 = vrot.slane %v1294, 7
        %v1297 = vshll.u32 %v825, 16
        %v1299 = vor.u32 %v1296, %v1297
        %v1301 = vshrl.u32 %v858, 16
        %v1303 = vrot.slane %v1301, 7
        %v1304 = vshll.u32 %v858, 16
        %v1306 = vor.u32 %v1303, %v1304
        %v1307 = vsel %vm1292, %v1296, %v1306
        %v1309 = vshrl.u32 %v859, 16
        %v1311 = vrot.slane %v1309, 7
        %v1312 = vshll.u32 %v859, 16
        %v1314 = vor.u32 %v1311, %v1312
        %v1315 = vsel %vm1292, %v1303, %v1314
        %v1317 = vshrl.u32 %v860, 16
        %v1319 = vrot.slane %v1317, 7
        %v1320 = vshll.u32 %v860, 16
        %v1322 = vor.u32 %v1319, %v1320
        %v1323 = vsel %vm1292, %v1311, %v1322
        %v1325 = vshrl.u32 %v861, 16
        %v1327 = vrot.slane %v1325, 7
        %v1328 = vshll.u32 %v861, 16
        %v1330 = vor.u32 %v1327, %v1328
        %v1331 = vsel %vm1292, %v1319, %v1330
        %v1333 = vshrl.u32 %v862, 16
        %v1335 = vrot.slane %v1333, 7
        %v1336 = vshll.u32 %v862, 16
        %v1338 = vor.u32 %v1335, %v1336
        %v1339 = vsel %vm1292, %v1327, %v1338
        %v1341 = vshrl.u32 %v863, 16
        %v1343 = vrot.slane %v1341, 7
        %v1344 = vshll.u32 %v863, 16
        %v1346 = vor.u32 %v1343, %v1344
        %v1347 = vsel %vm1292, %v1335, %v1346
        %v1349 = vshrl.u32 %v864, 16
        %v1351 = vrot.slane %v1349, 7
        %v1352 = vshll.u32 %v864, 16
        %v1354 = vor.u32 %v1351, %v1352
        %v1355 = vsel %vm1292, %v1343, %v1354
        %v1357 = vshrl.u32 %v865, 16
        %v1359 = vrot.slane %v1357, 7
        %v1360 = vshll.u32 %v865, 16
        %v1362 = vor.u32 %v1359, %v1360
        %v1363 = vsel %vm1292, %v1351, %v1362
        %v1365 = vshrl.u32 %v870, 16
        %v1367 = vrot.slane %v1365, 7
        %v1368 = vshll.u32 %v870, 16
        %v1370 = vor.u32 %v1367, %v1368
        %v1371 = vsel %vm1292, %v1359, %v1370
        %vm1382 = vcmask 1040384
        %vm1383 = vmand %vm1382, %vm1292
        %v1384 = vsel %vm1383, 0, %v1299
        %v1385 = vunpack.c.l.bf16 %v1384
        %v1386 = vunpack.c.h.bf16 %v1384
        %v1387 = vunpack.c.l.bf16 %v1307
        %v1388 = vunpack.c.h.bf16 %v1307
        %v1389 = vunpack.c.l.bf16 %v1315
        %v1390 = vunpack.c.h.bf16 %v1315
        %v1391 = vunpack.c.l.bf16 %v1323
        %v1392 = vunpack.c.h.bf16 %v1323
        %v1393 = vunpack.c.l.bf16 %v1331
        %v1394 = vunpack.c.h.bf16 %v1331
        %v1395 = vunpack.c.l.bf16 %v1339
        %v1396 = vunpack.c.h.bf16 %v1339
        %v1397 = vunpack.c.l.bf16 %v1347
        %v1398 = vunpack.c.h.bf16 %v1347
        %v1399 = vunpack.c.l.bf16 %v1355
        %v1400 = vunpack.c.h.bf16 %v1355
        %v1401 = vunpack.c.l.bf16 %v1363
        %v1402 = vunpack.c.h.bf16 %v1363
        %v1403 = vunpack.c.l.bf16 %v1371
        %v1404 = vunpack.c.h.bf16 %v1371
        %v1405 = vunpack.c.l.bf16 %v1192
        %v1406 = vunpack.c.l.bf16 %v1193
        %v1407 = vunpack.c.l.bf16 %v1194
        %v1408 = vunpack.c.l.bf16 %v1195
        %v1409 = vunpack.c.l.bf16 %v1196
        %v1410 = vunpack.c.l.bf16 %v1197
        %v1411 = vunpack.c.l.bf16 %v1198
        %v1412 = vunpack.c.l.bf16 %v1199
        %v1413 = vunpack.c.l.bf16 %v1200
        %v1414 = vunpack.c.l.bf16 %v1201
        %v1415 = vunpack.c.l.bf16 %v1202
        %v1416 = vunpack.c.l.bf16 %v1203
        %v1417 = vunpack.c.l.bf16 %v1204
        %v1418 = vunpack.c.l.bf16 %v1205
        %v1419 = vunpack.c.l.bf16 %v1206
        %v1420 = vunpack.c.l.bf16 %v1207
        %v1421 = vunpack.c.l.bf16 %v1208
        %v1422 = vunpack.c.l.bf16 %v1209
        %v1423 = vunpack.c.l.bf16 %v1210
        %v1424 = vunpack.c.l.bf16 %v1211
        %v1425 = vmul.f32 %v1385, %v1405
        %v1426 = vmul.f32 %v1386, %v1406
        %v1427 = vmul.f32 %v1387, %v1407
        %v1428 = vmul.f32 %v1388, %v1408
        %v1429 = vmul.f32 %v1389, %v1409
        %v1430 = vmul.f32 %v1390, %v1410
        %v1431 = vmul.f32 %v1391, %v1411
        %v1432 = vmul.f32 %v1392, %v1412
        %v1433 = vmul.f32 %v1393, %v1413
        %v1434 = vmul.f32 %v1394, %v1414
        %v1435 = vmul.f32 %v1395, %v1415
        %v1436 = vmul.f32 %v1396, %v1416
        %v1437 = vmul.f32 %v1397, %v1417
        %v1438 = vmul.f32 %v1398, %v1418
        %v1439 = vmul.f32 %v1399, %v1419
        %v1440 = vmul.f32 %v1400, %v1420
        %v1441 = vmul.f32 %v1401, %v1421
        %v1442 = vmul.f32 %v1402, %v1422
        %v1443 = vmul.f32 %v1403, %v1423
        %v1444 = vmul.f32 %v1404, %v1424
        %v1445 = vpack.c.bf16 %v1425, %v1425
        %v1446 = vpack.c.bf16 %v1426, %v1426
        %v1447 = vpack.c.bf16 %v1427, %v1427
        %v1448 = vpack.c.bf16 %v1428, %v1428
        %v1449 = vpack.c.bf16 %v1429, %v1429
        %v1450 = vpack.c.bf16 %v1430, %v1430
        %v1451 = vpack.c.bf16 %v1431, %v1431
        %v1452 = vpack.c.bf16 %v1432, %v1432
        %v1453 = vpack.c.bf16 %v1433, %v1433
        %v1454 = vpack.c.bf16 %v1434, %v1434
        %v1455 = vpack.c.bf16 %v1435, %v1435
        %v1456 = vpack.c.bf16 %v1436, %v1436
        %v1457 = vpack.c.bf16 %v1437, %v1437
        %v1458 = vpack.c.bf16 %v1438, %v1438
        %v1459 = vpack.c.bf16 %v1439, %v1439
        %v1460 = vpack.c.bf16 %v1440, %v1440
        %v1461 = vpack.c.bf16 %v1441, %v1441
        %v1462 = vpack.c.bf16 %v1442, %v1442
        %v1463 = vpack.c.bf16 %v1443, %v1443
        %v1464 = vpack.c.bf16 %v1444, %v1444
        %vm1465 = vsmask.f32 7424
        %v1466 = vrot.slane %v1297, 1
        %v1467 = vor.u32 %v1294, %v1466
        %v1468 = vrot.slane %v1304, 1
        %v1469 = vsel %vm1465, %v1467, %v1468
        %v1470 = vor.u32 %v1301, %v1468
        %v1471 = vrot.slane %v1312, 1
        %v1472 = vsel %vm1465, %v1470, %v1471
        %v1473 = vor.u32 %v1309, %v1471
        %v1474 = vrot.slane %v1320, 1
        %v1475 = vsel %vm1465, %v1473, %v1474
        %v1476 = vor.u32 %v1317, %v1474
        %v1477 = vrot.slane %v1328, 1
        %v1478 = vsel %vm1465, %v1476, %v1477
        %v1479 = vor.u32 %v1325, %v1477
        %v1480 = vrot.slane %v1336, 1
        %v1481 = vsel %vm1465, %v1479, %v1480
        %v1482 = vor.u32 %v1333, %v1480
        %v1483 = vrot.slane %v1344, 1
        %v1484 = vsel %vm1465, %v1482, %v1483
        %v1485 = vor.u32 %v1341, %v1483
        %v1486 = vrot.slane %v1352, 1
        %v1487 = vsel %vm1465, %v1485, %v1486
        %v1488 = vor.u32 %v1349, %v1486
        %v1489 = vrot.slane %v1360, 1
        %v1490 = vsel %vm1465, %v1488, %v1489
        %v1491 = vor.u32 %v1357, %v1489
        %v1492 = vrot.slane %v1368, 1
        %v1493 = vsel %vm1465, %v1491, %v1492
        %v1494 = vor.u32 %v1365, %v1492
        %vm1505 = vcmask 1047552
        %vm1506 = vmand %vm1505, %vm1465
        %v1507 = vsel %vm1506, %v1494, 0
        %v1508 = vunpack.c.l.bf16 %v1469
        %v1509 = vunpack.c.h.bf16 %v1469
        %v1510 = vunpack.c.l.bf16 %v1472
        %v1511 = vunpack.c.h.bf16 %v1472
        %v1512 = vunpack.c.l.bf16 %v1475
        %v1513 = vunpack.c.h.bf16 %v1475
        %v1514 = vunpack.c.l.bf16 %v1478
        %v1515 = vunpack.c.h.bf16 %v1478
        %v1516 = vunpack.c.l.bf16 %v1481
        %v1517 = vunpack.c.h.bf16 %v1481
        %v1518 = vunpack.c.l.bf16 %v1484
        %v1519 = vunpack.c.h.bf16 %v1484
        %v1520 = vunpack.c.l.bf16 %v1487
        %v1521 = vunpack.c.h.bf16 %v1487
        %v1522 = vunpack.c.l.bf16 %v1490
        %v1523 = vunpack.c.h.bf16 %v1490
        %v1524 = vunpack.c.l.bf16 %v1493
        %v1525 = vunpack.c.h.bf16 %v1493
        %v1526 = vunpack.c.l.bf16 %v1507
        %v1527 = vunpack.c.h.bf16 %v1507
        %v1528 = vunpack.c.l.bf16 %v1272
        %v1529 = vunpack.c.l.bf16 %v1273
        %v1530 = vunpack.c.l.bf16 %v1274
        %v1531 = vunpack.c.l.bf16 %v1275
        %v1532 = vunpack.c.l.bf16 %v1276
        %v1533 = vunpack.c.l.bf16 %v1277
        %v1534 = vunpack.c.l.bf16 %v1278
        %v1535 = vunpack.c.l.bf16 %v1279
        %v1536 = vunpack.c.l.bf16 %v1280
        %v1537 = vunpack.c.l.bf16 %v1281
        %v1538 = vunpack.c.l.bf16 %v1282
        %v1539 = vunpack.c.l.bf16 %v1283
        %v1540 = vunpack.c.l.bf16 %v1284
        %v1541 = vunpack.c.l.bf16 %v1285
        %v1542 = vunpack.c.l.bf16 %v1286
        %v1543 = vunpack.c.l.bf16 %v1287
        %v1544 = vunpack.c.l.bf16 %v1288
        %v1545 = vunpack.c.l.bf16 %v1289
        %v1546 = vunpack.c.l.bf16 %v1290
        %v1547 = vunpack.c.l.bf16 %v1291
        %v1548 = vmul.f32 %v1508, %v1528
        %v1549 = vmul.f32 %v1509, %v1529
        %v1550 = vmul.f32 %v1510, %v1530
        %v1551 = vmul.f32 %v1511, %v1531
        %v1552 = vmul.f32 %v1512, %v1532
        %v1553 = vmul.f32 %v1513, %v1533
        %v1554 = vmul.f32 %v1514, %v1534
        %v1555 = vmul.f32 %v1515, %v1535
        %v1556 = vmul.f32 %v1516, %v1536
        %v1557 = vmul.f32 %v1517, %v1537
        %v1558 = vmul.f32 %v1518, %v1538
        %v1559 = vmul.f32 %v1519, %v1539
        %v1560 = vmul.f32 %v1520, %v1540
        %v1561 = vmul.f32 %v1521, %v1541
        %v1562 = vmul.f32 %v1522, %v1542
        %v1563 = vmul.f32 %v1523, %v1543
        %v1564 = vmul.f32 %v1524, %v1544
        %v1565 = vmul.f32 %v1525, %v1545
        %v1566 = vmul.f32 %v1526, %v1546
        %v1567 = vmul.f32 %v1527, %v1547
        %v1568 = vpack.c.bf16 %v1548, %v1548
        %v1569 = vpack.c.bf16 %v1549, %v1549
        %v1570 = vpack.c.bf16 %v1550, %v1550
        %v1571 = vpack.c.bf16 %v1551, %v1551
        %v1572 = vpack.c.bf16 %v1552, %v1552
        %v1573 = vpack.c.bf16 %v1553, %v1553
        %v1574 = vpack.c.bf16 %v1554, %v1554
        %v1575 = vpack.c.bf16 %v1555, %v1555
        %v1576 = vpack.c.bf16 %v1556, %v1556
        %v1577 = vpack.c.bf16 %v1557, %v1557
        %v1578 = vpack.c.bf16 %v1558, %v1558
        %v1579 = vpack.c.bf16 %v1559, %v1559
        %v1580 = vpack.c.bf16 %v1560, %v1560
        %v1581 = vpack.c.bf16 %v1561, %v1561
        %v1582 = vpack.c.bf16 %v1562, %v1562
        %v1583 = vpack.c.bf16 %v1563, %v1563
        %v1584 = vpack.c.bf16 %v1564, %v1564
        %v1585 = vpack.c.bf16 %v1565, %v1565
        %v1586 = vpack.c.bf16 %v1566, %v1566
        %v1587 = vpack.c.bf16 %v1567, %v1567
        %v1588 = vld [vmem:[%s6] sm:$0xf]
        %v1589 = vld [vmem:[%s6 + $0x4] sm:$0xf]
        %s1590 = scalar_lea.vmem %s6, 8
        %v1591 = vld [vmem:[%s1590] sm:$0xf]
        %v1592 = vld [vmem:[%s1590 + $0x4] sm:$0xf]
        %v1595 = vunpack.c.l.b16 %v1591
        %v1596 = vunpack.c.l.b16 %v1592
        %v1597 = vpack.c.b16 %v1596, %v1595
        %vm1599 = vcmask 130048
        %v1600 = vsel %vm1599, %v825, 0
        %v1602 = vsel %vm1599, %v858, 0
        %v1604 = vsel %vm1599, %v859, 0
        %v1606 = vsel %vm1599, %v860, 0
        %v1608 = vsel %vm1599, %v861, 0
        %v1610 = vsel %vm1599, %v862, 0
        %v1612 = vsel %vm1599, %v863, 0
        %v1614 = vsel %vm1599, %v864, 0
        %1616 = vmatpush.bf16.msra.mxu0 0
        %1617 = vmatpush.bf16.msra.mxu0 0
        %1618 = vmatpush.bf16.msra.mxu0 0
        %1619 = vmatpush.bf16.msra.mxu0 0
        %1620 = vmatpush.bf16.msra.mxu0 0
        %1621 = vmatpush.bf16.msra.mxu0 0
        %1622 = vmatpush.bf16.msra.mxu0 0
        %1623 = vmatpush.bf16.msra.mxu0 %v1597
        %1624 = vmatmul.bf16.gmra.mxu0 %v1600
        %v1625 = vpop.f32.mrf.mxu0
        %v1626 = vadd.f32 0.0, %v1625
        %v1627 = vpop.f32.mrf.mxu0
        %v1628 = vadd.f32 0.0, %v1627
        %1629 = vmatmul.bf16.gmra.mxu0 %v1602
        %v1630 = vpop.f32.mrf.mxu0
        %v1631 = vadd.f32 0.0, %v1630
        %v1632 = vpop.f32.mrf.mxu0
        %v1633 = vadd.f32 0.0, %v1632
        %1634 = vmatmul.bf16.gmra.mxu0 %v1604
        %v1635 = vpop.f32.mrf.mxu0
        %v1636 = vadd.f32 0.0, %v1635
        %v1637 = vpop.f32.mrf.mxu0
        %v1638 = vadd.f32 0.0, %v1637
        %1639 = vmatmul.bf16.gmra.mxu0 %v1606
        %v1640 = vpop.f32.mrf.mxu0
        %v1641 = vadd.f32 0.0, %v1640
        %v1642 = vpop.f32.mrf.mxu0
        %v1643 = vadd.f32 0.0, %v1642
        %1644 = vmatmul.bf16.gmra.mxu0 %v1608
        %v1645 = vpop.f32.mrf.mxu0
        %v1646 = vadd.f32 0.0, %v1645
        %v1647 = vpop.f32.mrf.mxu0
        %v1648 = vadd.f32 0.0, %v1647
        %1649 = vmatmul.bf16.gmra.mxu0 %v1610
        %v1650 = vpop.f32.mrf.mxu0
        %v1651 = vadd.f32 0.0, %v1650
        %v1652 = vpop.f32.mrf.mxu0
        %v1653 = vadd.f32 0.0, %v1652
        %1654 = vmatmul.bf16.gmra.mxu0 %v1612
        %v1655 = vpop.f32.mrf.mxu0
        %v1656 = vadd.f32 0.0, %v1655
        %v1657 = vpop.f32.mrf.mxu0
        %v1658 = vadd.f32 0.0, %v1657
        %1659 = vmatmul.bf16.gmra.mxu0 %v1614
        %v1660 = vpop.f32.mrf.mxu0
        %v1661 = vadd.f32 0.0, %v1660
        %v1662 = vpop.f32.mrf.mxu0
        %v1663 = vadd.f32 0.0, %v1662
        %1664 = vdwg.mxu0
        %v1681 = vunpack.c.l.b16 %v1445
        %v1682 = vunpack.c.l.b16 %v1446
        %v1683 = vunpack.c.l.b16 %v1447
        %v1684 = vunpack.c.l.b16 %v1448
        %v1685 = vunpack.c.l.b16 %v1449
        %v1686 = vunpack.c.l.b16 %v1450
        %v1687 = vunpack.c.l.b16 %v1451
        %v1688 = vunpack.c.l.b16 %v1452
        %v1689 = vunpack.c.l.b16 %v1453
        %v1690 = vunpack.c.l.b16 %v1454
        %v1691 = vunpack.c.l.b16 %v1455
        %v1692 = vunpack.c.l.b16 %v1456
        %v1693 = vunpack.c.l.b16 %v1457
        %v1694 = vunpack.c.l.b16 %v1458
        %v1695 = vunpack.c.l.b16 %v1459
        %v1696 = vunpack.c.l.b16 %v1460
        %v1697 = vpack.c.b16 %v1682, %v1681
        %v1698 = vpack.c.b16 %v1684, %v1683
        %v1699 = vpack.c.b16 %v1686, %v1685
        %v1700 = vpack.c.b16 %v1688, %v1687
        %v1701 = vpack.c.b16 %v1690, %v1689
        %v1702 = vpack.c.b16 %v1692, %v1691
        %v1703 = vpack.c.b16 %v1694, %v1693
        %v1704 = vpack.c.b16 %v1696, %v1695
        %v1707 = vunpack.c.l.b16 %v1588
        %v1708 = vunpack.c.l.b16 %v1589
        %v1709 = vpack.c.b16 %v1708, %v1707
        %v1712 = vsel %vm1599, %v1697, 0
        %v1715 = vsel %vm1599, %v1698, 0
        %v1718 = vsel %vm1599, %v1699, 0
        %v1721 = vsel %vm1599, %v1700, 0
        %v1724 = vsel %vm1599, %v1701, 0
        %v1727 = vsel %vm1599, %v1702, 0
        %v1730 = vsel %vm1599, %v1703, 0
        %v1733 = vsel %vm1599, %v1704, 0
        %1735 = vmatpush.bf16.msra.mxu0 0
        %1736 = vmatpush.bf16.msra.mxu0 0
        %1737 = vmatpush.bf16.msra.mxu0 0
        %1738 = vmatpush.bf16.msra.mxu0 0
        %1739 = vmatpush.bf16.msra.mxu0 0
        %1740 = vmatpush.bf16.msra.mxu0 0
        %1741 = vmatpush.bf16.msra.mxu0 0
        %1742 = vmatpush.bf16.msra.mxu0 %v1709
        %1743 = vmatmul.bf16.gmra.mxu0 %v1712
        %v1744 = vpop.f32.mrf.mxu0
        %v1745 = vadd.f32 %v1626, %v1744
        %v1746 = vpop.f32.mrf.mxu0
        %v1747 = vadd.f32 %v1628, %v1746
        %1748 = vmatmul.bf16.gmra.mxu0 %v1715
        %v1749 = vpop.f32.mrf.mxu0
        %v1750 = vadd.f32 %v1631, %v1749
        %v1751 = vpop.f32.mrf.mxu0
        %v1752 = vadd.f32 %v1633, %v1751
        %1753 = vmatmul.bf16.gmra.mxu0 %v1718
        %v1754 = vpop.f32.mrf.mxu0
        %v1755 = vadd.f32 %v1636, %v1754
        %v1756 = vpop.f32.mrf.mxu0
        %v1757 = vadd.f32 %v1638, %v1756
        %1758 = vmatmul.bf16.gmra.mxu0 %v1721
        %v1759 = vpop.f32.mrf.mxu0
        %v1760 = vadd.f32 %v1641, %v1759
        %v1761 = vpop.f32.mrf.mxu0
        %v1762 = vadd.f32 %v1643, %v1761
        %1763 = vmatmul.bf16.gmra.mxu0 %v1724
        %v1764 = vpop.f32.mrf.mxu0
        %v1765 = vadd.f32 %v1646, %v1764
        %v1766 = vpop.f32.mrf.mxu0
        %v1767 = vadd.f32 %v1648, %v1766
        %1768 = vmatmul.bf16.gmra.mxu0 %v1727
        %v1769 = vpop.f32.mrf.mxu0
        %v1770 = vadd.f32 %v1651, %v1769
        %v1771 = vpop.f32.mrf.mxu0
        %v1772 = vadd.f32 %v1653, %v1771
        %1773 = vmatmul.bf16.gmra.mxu0 %v1730
        %v1774 = vpop.f32.mrf.mxu0
        %v1775 = vadd.f32 %v1656, %v1774
        %v1776 = vpop.f32.mrf.mxu0
        %v1777 = vadd.f32 %v1658, %v1776
        %1778 = vmatmul.bf16.gmra.mxu0 %v1733
        %v1779 = vpop.f32.mrf.mxu0
        %v1780 = vadd.f32 %v1661, %v1779
        %v1781 = vpop.f32.mrf.mxu0
        %v1782 = vadd.f32 %v1663, %v1781
        %1783 = vdwg.mxu0
        %s1784 = scalar_lea.vmem %s6, 16
        %v1785 = vld [vmem:[%s1784] sm:$0xf]
        %v1786 = vld [vmem:[%s1784 + $0x4] sm:$0xf]
        %v1803 = vunpack.c.l.b16 %v1568
        %v1804 = vunpack.c.l.b16 %v1569
        %v1805 = vunpack.c.l.b16 %v1570
        %v1806 = vunpack.c.l.b16 %v1571
        %v1807 = vunpack.c.l.b16 %v1572
        %v1808 = vunpack.c.l.b16 %v1573
        %v1809 = vunpack.c.l.b16 %v1574
        %v1810 = vunpack.c.l.b16 %v1575
        %v1811 = vunpack.c.l.b16 %v1576
        %v1812 = vunpack.c.l.b16 %v1577
        %v1813 = vunpack.c.l.b16 %v1578
        %v1814 = vunpack.c.l.b16 %v1579
        %v1815 = vunpack.c.l.b16 %v1580
        %v1816 = vunpack.c.l.b16 %v1581
        %v1817 = vunpack.c.l.b16 %v1582
        %v1818 = vunpack.c.l.b16 %v1583
        %v1819 = vpack.c.b16 %v1804, %v1803
        %v1820 = vpack.c.b16 %v1806, %v1805
        %v1821 = vpack.c.b16 %v1808, %v1807
        %v1822 = vpack.c.b16 %v1810, %v1809
        %v1823 = vpack.c.b16 %v1812, %v1811
        %v1824 = vpack.c.b16 %v1814, %v1813
        %v1825 = vpack.c.b16 %v1816, %v1815
        %v1826 = vpack.c.b16 %v1818, %v1817
        %v1829 = vunpack.c.l.b16 %v1785
        %v1830 = vunpack.c.l.b16 %v1786
        %v1831 = vpack.c.b16 %v1830, %v1829
        %v1834 = vsel %vm1599, %v1819, 0
        %v1837 = vsel %vm1599, %v1820, 0
        %v1840 = vsel %vm1599, %v1821, 0
        %v1843 = vsel %vm1599, %v1822, 0
        %v1846 = vsel %vm1599, %v1823, 0
        %v1849 = vsel %vm1599, %v1824, 0
        %v1852 = vsel %vm1599, %v1825, 0
        %v1855 = vsel %vm1599, %v1826, 0
        %1857 = vmatpush.bf16.msra.mxu0 0
        %1858 = vmatpush.bf16.msra.mxu0 0
        %1859 = vmatpush.bf16.msra.mxu0 0
        %1860 = vmatpush.bf16.msra.mxu0 0
        %1861 = vmatpush.bf16.msra.mxu0 0
        %1862 = vmatpush.bf16.msra.mxu0 0
        %1863 = vmatpush.bf16.msra.mxu0 0
        %1864 = vmatpush.bf16.msra.mxu0 %v1831
        %1865 = vmatmul.bf16.gmra.mxu0 %v1834
        %v1866 = vpop.f32.mrf.mxu0
        %v1867 = vadd.f32 0.0, %v1866
        %v1868 = vpop.f32.mrf.mxu0
        %v1869 = vadd.f32 0.0, %v1868
        %1870 = vmatmul.bf16.gmra.mxu0 %v1837
        %v1871 = vpop.f32.mrf.mxu0
        %v1872 = vadd.f32 0.0, %v1871
        %v1873 = vpop.f32.mrf.mxu0
        %v1874 = vadd.f32 0.0, %v1873
        %1875 = vmatmul.bf16.gmra.mxu0 %v1840
        %v1876 = vpop.f32.mrf.mxu0
        %v1877 = vadd.f32 0.0, %v1876
        %v1878 = vpop.f32.mrf.mxu0
        %v1879 = vadd.f32 0.0, %v1878
        %1880 = vmatmul.bf16.gmra.mxu0 %v1843
        %v1881 = vpop.f32.mrf.mxu0
        %v1882 = vadd.f32 0.0, %v1881
        %v1883 = vpop.f32.mrf.mxu0
        %v1884 = vadd.f32 0.0, %v1883
        %1885 = vmatmul.bf16.gmra.mxu0 %v1846
        %v1886 = vpop.f32.mrf.mxu0
        %v1887 = vadd.f32 0.0, %v1886
        %v1888 = vpop.f32.mrf.mxu0
        %v1889 = vadd.f32 0.0, %v1888
        %1890 = vmatmul.bf16.gmra.mxu0 %v1849
        %v1891 = vpop.f32.mrf.mxu0
        %v1892 = vadd.f32 0.0, %v1891
        %v1893 = vpop.f32.mrf.mxu0
        %v1894 = vadd.f32 0.0, %v1893
        %1895 = vmatmul.bf16.gmra.mxu0 %v1852
        %v1896 = vpop.f32.mrf.mxu0
        %v1897 = vadd.f32 0.0, %v1896
        %v1898 = vpop.f32.mrf.mxu0
        %v1899 = vadd.f32 0.0, %v1898
        %1900 = vmatmul.bf16.gmra.mxu0 %v1855
        %v1901 = vpop.f32.mrf.mxu0
        %v1902 = vadd.f32 0.0, %v1901
        %v1903 = vpop.f32.mrf.mxu0
        %v1904 = vadd.f32 0.0, %v1903
        %1905 = vdwg.mxu0
        %v1906 = vadd.f32 %v1745, %v1867
        %v1907 = vadd.f32 %v1747, %v1869
        %v1908 = vadd.f32 %v1750, %v1872
        %v1909 = vadd.f32 %v1752, %v1874
        %v1910 = vadd.f32 %v1755, %v1877
        %v1911 = vadd.f32 %v1757, %v1879
        %v1912 = vadd.f32 %v1760, %v1882
        %v1913 = vadd.f32 %v1762, %v1884
        %v1914 = vadd.f32 %v1765, %v1887
        %v1915 = vadd.f32 %v1767, %v1889
        %v1916 = vadd.f32 %v1770, %v1892
        %v1917 = vadd.f32 %v1772, %v1894
        %v1918 = vadd.f32 %v1775, %v1897
        %v1919 = vadd.f32 %v1777, %v1899
        %v1920 = vadd.f32 %v1780, %v1902
        %v1921 = vadd.f32 %v1782, %v1904
        %s1922 = scalar_lea.vmem %s6, 24
        %v1923 = vld [vmem:[%s1922] sm:$0xf]
        %v1924 = vld [vmem:[%s1922 + $0x4] sm:$0xf]
        %v1927 = vunpack.c.l.b16 %v1461
        %v1928 = vunpack.c.l.b16 %v1462
        %v1929 = vpack.c.b16 %v1928, %v1927
        %v1932 = vunpack.c.l.b16 %v1923
        %v1933 = vunpack.c.l.b16 %v1924
        %v1934 = vpack.c.b16 %v1933, %v1932
        %v1937 = vsel %vm1599, %v1929, 0
        %1939 = vmatpush.bf16.msra.mxu0 0
        %1940 = vmatpush.bf16.msra.mxu0 0
        %1941 = vmatpush.bf16.msra.mxu0 0
        %1942 = vmatpush.bf16.msra.mxu0 0
        %1943 = vmatpush.bf16.msra.mxu0 0
        %1944 = vmatpush.bf16.msra.mxu0 0
        %1945 = vmatpush.bf16.msra.mxu0 0
        %1946 = vmatpush.bf16.msra.mxu0 %v1934
        %1947 = vmatmul.bf16.gmra.mxu0 %v1715
        %v1948 = vpop.f32.mrf.mxu0
        %v1949 = vadd.f32 0.0, %v1948
        %v1950 = vpop.f32.mrf.mxu0
        %v1951 = vadd.f32 0.0, %v1950
        %1952 = vmatmul.bf16.gmra.mxu0 %v1718
        %v1953 = vpop.f32.mrf.mxu0
        %v1954 = vadd.f32 0.0, %v1953
        %v1955 = vpop.f32.mrf.mxu0
        %v1956 = vadd.f32 0.0, %v1955
        %1957 = vmatmul.bf16.gmra.mxu0 %v1721
        %v1958 = vpop.f32.mrf.mxu0
        %v1959 = vadd.f32 0.0, %v1958
        %v1960 = vpop.f32.mrf.mxu0
        %v1961 = vadd.f32 0.0, %v1960
        %1962 = vmatmul.bf16.gmra.mxu0 %v1724
        %v1963 = vpop.f32.mrf.mxu0
        %v1964 = vadd.f32 0.0, %v1963
        %v1965 = vpop.f32.mrf.mxu0
        %v1966 = vadd.f32 0.0, %v1965
        %1967 = vmatmul.bf16.gmra.mxu0 %v1727
        %v1968 = vpop.f32.mrf.mxu0
        %v1969 = vadd.f32 0.0, %v1968
        %v1970 = vpop.f32.mrf.mxu0
        %v1971 = vadd.f32 0.0, %v1970
        %1972 = vmatmul.bf16.gmra.mxu0 %v1730
        %v1973 = vpop.f32.mrf.mxu0
        %v1974 = vadd.f32 0.0, %v1973
        %v1975 = vpop.f32.mrf.mxu0
        %v1976 = vadd.f32 0.0, %v1975
        %1977 = vmatmul.bf16.gmra.mxu0 %v1733
        %v1978 = vpop.f32.mrf.mxu0
        %v1979 = vadd.f32 0.0, %v1978
        %v1980 = vpop.f32.mrf.mxu0
        %v1981 = vadd.f32 0.0, %v1980
        %1982 = vmatmul.bf16.gmra.mxu0 %v1937
        %v1983 = vpop.f32.mrf.mxu0
        %v1984 = vadd.f32 0.0, %v1983
        %v1985 = vpop.f32.mrf.mxu0
        %v1986 = vadd.f32 0.0, %v1985
        %1987 = vdwg.mxu0
        %v1988 = vadd.f32 %v1906, %v1949
        %v1989 = vadd.f32 %v1907, %v1951
        %v1990 = vadd.f32 %v1908, %v1954
        %v1991 = vadd.f32 %v1909, %v1956
        %v1992 = vadd.f32 %v1910, %v1959
        %v1993 = vadd.f32 %v1911, %v1961
        %v1994 = vadd.f32 %v1912, %v1964
        %v1995 = vadd.f32 %v1913, %v1966
        %v1996 = vadd.f32 %v1914, %v1969
        %v1997 = vadd.f32 %v1915, %v1971
        %v1998 = vadd.f32 %v1916, %v1974
        %v1999 = vadd.f32 %v1917, %v1976
        %v2000 = vadd.f32 %v1918, %v1979
        %v2001 = vadd.f32 %v1919, %v1981
        %v2002 = vadd.f32 %v1920, %v1984
        %v2003 = vadd.f32 %v1921, %v1986
        %s2004 = scalar_lea.vmem %s6, 32
        %v2005 = vld [vmem:[%s2004] sm:$0xf]
        %v2006 = vld [vmem:[%s2004 + $0x4] sm:$0xf]
        %v2009 = vunpack.c.l.b16 %v2005
        %v2010 = vunpack.c.l.b16 %v2006
        %v2011 = vpack.c.b16 %v2010, %v2009
        %v2013 = vsel %vm1599, %v865, 0
        %2015 = vmatpush.bf16.msra.mxu0 0
        %2016 = vmatpush.bf16.msra.mxu0 0
        %2017 = vmatpush.bf16.msra.mxu0 0
        %2018 = vmatpush.bf16.msra.mxu0 0
        %2019 = vmatpush.bf16.msra.mxu0 0
        %2020 = vmatpush.bf16.msra.mxu0 0
        %2021 = vmatpush.bf16.msra.mxu0 0
        %2022 = vmatpush.bf16.msra.mxu0 %v2011
        %2023 = vmatmul.bf16.gmra.mxu0 %v1602
        %v2024 = vpop.f32.mrf.mxu0
        %v2025 = vadd.f32 0.0, %v2024
        %v2026 = vpop.f32.mrf.mxu0
        %v2027 = vadd.f32 0.0, %v2026
        %2028 = vmatmul.bf16.gmra.mxu0 %v1604
        %v2029 = vpop.f32.mrf.mxu0
        %v2030 = vadd.f32 0.0, %v2029
        %v2031 = vpop.f32.mrf.mxu0
        %v2032 = vadd.f32 0.0, %v2031
        %2033 = vmatmul.bf16.gmra.mxu0 %v1606
        %v2034 = vpop.f32.mrf.mxu0
        %v2035 = vadd.f32 0.0, %v2034
        %v2036 = vpop.f32.mrf.mxu0
        %v2037 = vadd.f32 0.0, %v2036
        %2038 = vmatmul.bf16.gmra.mxu0 %v1608
        %v2039 = vpop.f32.mrf.mxu0
        %v2040 = vadd.f32 0.0, %v2039
        %v2041 = vpop.f32.mrf.mxu0
        %v2042 = vadd.f32 0.0, %v2041
        %2043 = vmatmul.bf16.gmra.mxu0 %v1610
        %v2044 = vpop.f32.mrf.mxu0
        %v2045 = vadd.f32 0.0, %v2044
        %v2046 = vpop.f32.mrf.mxu0
        %v2047 = vadd.f32 0.0, %v2046
        %2048 = vmatmul.bf16.gmra.mxu0 %v1612
        %v2049 = vpop.f32.mrf.mxu0
        %v2050 = vadd.f32 0.0, %v2049
        %v2051 = vpop.f32.mrf.mxu0
        %v2052 = vadd.f32 0.0, %v2051
        %2053 = vmatmul.bf16.gmra.mxu0 %v1614
        %v2054 = vpop.f32.mrf.mxu0
        %v2055 = vadd.f32 0.0, %v2054
        %v2056 = vpop.f32.mrf.mxu0
        %v2057 = vadd.f32 0.0, %v2056
        %2058 = vmatmul.bf16.gmra.mxu0 %v2013
        %v2059 = vpop.f32.mrf.mxu0
        %v2060 = vadd.f32 0.0, %v2059
        %v2061 = vpop.f32.mrf.mxu0
        %v2062 = vadd.f32 0.0, %v2061
        %2063 = vdwg.mxu0
        %v2064 = vadd.f32 %v1988, %v2025
        %v2065 = vadd.f32 %v1989, %v2027
        %v2066 = vadd.f32 %v1990, %v2030
        %v2067 = vadd.f32 %v1991, %v2032
        %v2068 = vadd.f32 %v1992, %v2035
        %v2069 = vadd.f32 %v1993, %v2037
        %v2070 = vadd.f32 %v1994, %v2040
        %v2071 = vadd.f32 %v1995, %v2042
        %v2072 = vadd.f32 %v1996, %v2045
        %v2073 = vadd.f32 %v1997, %v2047
        %v2074 = vadd.f32 %v1998, %v2050
        %v2075 = vadd.f32 %v1999, %v2052
        %v2076 = vadd.f32 %v2000, %v2055
        %v2077 = vadd.f32 %v2001, %v2057
        %v2078 = vadd.f32 %v2002, %v2060
        %v2079 = vadd.f32 %v2003, %v2062
        %s2080 = scalar_lea.vmem %s6, 40
        %v2081 = vld [vmem:[%s2080] sm:$0xf]
        %v2082 = vld [vmem:[%s2080 + $0x4] sm:$0xf]
        %v2085 = vunpack.c.l.b16 %v1584
        %v2086 = vunpack.c.l.b16 %v1585
        %v2087 = vpack.c.b16 %v2086, %v2085
        %v2090 = vunpack.c.l.b16 %v2081
        %v2091 = vunpack.c.l.b16 %v2082
        %v2092 = vpack.c.b16 %v2091, %v2090
        %v2095 = vsel %vm1599, %v2087, 0
        %2097 = vmatpush.bf16.msra.mxu0 0
        %2098 = vmatpush.bf16.msra.mxu0 0
        %2099 = vmatpush.bf16.msra.mxu0 0
        %2100 = vmatpush.bf16.msra.mxu0 0
        %2101 = vmatpush.bf16.msra.mxu0 0
        %2102 = vmatpush.bf16.msra.mxu0 0
        %2103 = vmatpush.bf16.msra.mxu0 0
        %2104 = vmatpush.bf16.msra.mxu0 %v2092
        %2105 = vmatmul.bf16.gmra.mxu0 %v1837
        %v2106 = vpop.f32.mrf.mxu0
        %v2107 = vadd.f32 0.0, %v2106
        %v2108 = vpop.f32.mrf.mxu0
        %v2109 = vadd.f32 0.0, %v2108
        %2110 = vmatmul.bf16.gmra.mxu0 %v1840
        %v2111 = vpop.f32.mrf.mxu0
        %v2112 = vadd.f32 0.0, %v2111
        %v2113 = vpop.f32.mrf.mxu0
        %v2114 = vadd.f32 0.0, %v2113
        %2115 = vmatmul.bf16.gmra.mxu0 %v1843
        %v2116 = vpop.f32.mrf.mxu0
        %v2117 = vadd.f32 0.0, %v2116
        %v2118 = vpop.f32.mrf.mxu0
        %v2119 = vadd.f32 0.0, %v2118
        %2120 = vmatmul.bf16.gmra.mxu0 %v1846
        %v2121 = vpop.f32.mrf.mxu0
        %v2122 = vadd.f32 0.0, %v2121
        %v2123 = vpop.f32.mrf.mxu0
        %v2124 = vadd.f32 0.0, %v2123
        %2125 = vmatmul.bf16.gmra.mxu0 %v1849
        %v2126 = vpop.f32.mrf.mxu0
        %v2127 = vadd.f32 0.0, %v2126
        %v2128 = vpop.f32.mrf.mxu0
        %v2129 = vadd.f32 0.0, %v2128
        %2130 = vmatmul.bf16.gmra.mxu0 %v1852
        %v2131 = vpop.f32.mrf.mxu0
        %v2132 = vadd.f32 0.0, %v2131
        %v2133 = vpop.f32.mrf.mxu0
        %v2134 = vadd.f32 0.0, %v2133
        %2135 = vmatmul.bf16.gmra.mxu0 %v1855
        %v2136 = vpop.f32.mrf.mxu0
        %v2137 = vadd.f32 0.0, %v2136
        %v2138 = vpop.f32.mrf.mxu0
        %v2139 = vadd.f32 0.0, %v2138
        %2140 = vmatmul.bf16.gmra.mxu0 %v2095
        %v2141 = vpop.f32.mrf.mxu0
        %v2142 = vadd.f32 0.0, %v2141
        %v2143 = vpop.f32.mrf.mxu0
        %v2144 = vadd.f32 0.0, %v2143
        %2145 = vdwg.mxu0
        %v2146 = vadd.f32 %v2064, %v2107
        %v2147 = vadd.f32 %v2065, %v2109
        %v2148 = vadd.f32 %v2066, %v2112
        %v2149 = vadd.f32 %v2067, %v2114
        %v2150 = vadd.f32 %v2068, %v2117
        %v2151 = vadd.f32 %v2069, %v2119
        %v2152 = vadd.f32 %v2070, %v2122
        %v2153 = vadd.f32 %v2071, %v2124
        %v2154 = vadd.f32 %v2072, %v2127
        %v2155 = vadd.f32 %v2073, %v2129
        %v2156 = vadd.f32 %v2074, %v2132
        %v2157 = vadd.f32 %v2075, %v2134
        %v2158 = vadd.f32 %v2076, %v2137
        %v2159 = vadd.f32 %v2077, %v2139
        %v2160 = vadd.f32 %v2078, %v2142
        %v2161 = vadd.f32 %v2079, %v2144
        %s2162 = scalar_lea.vmem %s6, 48
        %v2163 = vld [vmem:[%s2162] sm:$0xf]
        %v2164 = vld [vmem:[%s2162 + $0x4] sm:$0xf]
        %v2167 = vunpack.c.l.b16 %v1463
        %v2168 = vunpack.c.l.b16 %v1464
        %v2169 = vpack.c.b16 %v2168, %v2167
        %v2172 = vunpack.c.l.b16 %v2163
        %v2173 = vunpack.c.l.b16 %v2164
        %v2174 = vpack.c.b16 %v2173, %v2172
        %v2177 = vsel %vm1599, %v2169, 0
        %2179 = vmatpush.bf16.msra.mxu0 0
        %2180 = vmatpush.bf16.msra.mxu0 0
        %2181 = vmatpush.bf16.msra.mxu0 0
        %2182 = vmatpush.bf16.msra.mxu0 0
        %2183 = vmatpush.bf16.msra.mxu0 0
        %2184 = vmatpush.bf16.msra.mxu0 0
        %2185 = vmatpush.bf16.msra.mxu0 0
        %2186 = vmatpush.bf16.msra.mxu0 %v2174
        %2187 = vmatmul.bf16.gmra.mxu0 %v1718
        %v2188 = vpop.f32.mrf.mxu0
        %v2189 = vadd.f32 0.0, %v2188
        %v2190 = vpop.f32.mrf.mxu0
        %v2191 = vadd.f32 0.0, %v2190
        %2192 = vmatmul.bf16.gmra.mxu0 %v1721
        %v2193 = vpop.f32.mrf.mxu0
        %v2194 = vadd.f32 0.0, %v2193
        %v2195 = vpop.f32.mrf.mxu0
        %v2196 = vadd.f32 0.0, %v2195
        %2197 = vmatmul.bf16.gmra.mxu0 %v1724
        %v2198 = vpop.f32.mrf.mxu0
        %v2199 = vadd.f32 0.0, %v2198
        %v2200 = vpop.f32.mrf.mxu0
        %v2201 = vadd.f32 0.0, %v2200
        %2202 = vmatmul.bf16.gmra.mxu0 %v1727
        %v2203 = vpop.f32.mrf.mxu0
        %v2204 = vadd.f32 0.0, %v2203
        %v2205 = vpop.f32.mrf.mxu0
        %v2206 = vadd.f32 0.0, %v2205
        %2207 = vmatmul.bf16.gmra.mxu0 %v1730
        %v2208 = vpop.f32.mrf.mxu0
        %v2209 = vadd.f32 0.0, %v2208
        %v2210 = vpop.f32.mrf.mxu0
        %v2211 = vadd.f32 0.0, %v2210
        %2212 = vmatmul.bf16.gmra.mxu0 %v1733
        %v2213 = vpop.f32.mrf.mxu0
        %v2214 = vadd.f32 0.0, %v2213
        %v2215 = vpop.f32.mrf.mxu0
        %v2216 = vadd.f32 0.0, %v2215
        %2217 = vmatmul.bf16.gmra.mxu0 %v1937
        %v2218 = vpop.f32.mrf.mxu0
        %v2219 = vadd.f32 0.0, %v2218
        %v2220 = vpop.f32.mrf.mxu0
        %v2221 = vadd.f32 0.0, %v2220
        %2222 = vmatmul.bf16.gmra.mxu0 %v2177
        %v2223 = vpop.f32.mrf.mxu0
        %v2224 = vadd.f32 0.0, %v2223
        %v2225 = vpop.f32.mrf.mxu0
        %v2226 = vadd.f32 0.0, %v2225
        %2227 = vdwg.mxu0
        %v2228 = vadd.f32 %v2146, %v2189
        %v2229 = vadd.f32 %v2147, %v2191
        %v2230 = vadd.f32 %v2148, %v2194
        %v2231 = vadd.f32 %v2149, %v2196
        %v2232 = vadd.f32 %v2150, %v2199
        %v2233 = vadd.f32 %v2151, %v2201
        %v2234 = vadd.f32 %v2152, %v2204
        %v2235 = vadd.f32 %v2153, %v2206
        %v2236 = vadd.f32 %v2154, %v2209
        %v2237 = vadd.f32 %v2155, %v2211
        %v2238 = vadd.f32 %v2156, %v2214
        %v2239 = vadd.f32 %v2157, %v2216
        %v2240 = vadd.f32 %v2158, %v2219
        %v2241 = vadd.f32 %v2159, %v2221
        %v2242 = vadd.f32 %v2160, %v2224
        %v2243 = vadd.f32 %v2161, %v2226
        %s2244 = scalar_lea.vmem %s6, 56
        %v2245 = vld [vmem:[%s2244] sm:$0xf]
        %v2246 = vld [vmem:[%s2244 + $0x4] sm:$0xf]
        %v2249 = vunpack.c.l.b16 %v2245
        %v2250 = vunpack.c.l.b16 %v2246
        %v2251 = vpack.c.b16 %v2250, %v2249
        %v2253 = vsel %vm1599, %v870, 0
        %2255 = vmatpush.bf16.msra.mxu0 0
        %2256 = vmatpush.bf16.msra.mxu0 0
        %2257 = vmatpush.bf16.msra.mxu0 0
        %2258 = vmatpush.bf16.msra.mxu0 0
        %2259 = vmatpush.bf16.msra.mxu0 0
        %2260 = vmatpush.bf16.msra.mxu0 0
        %2261 = vmatpush.bf16.msra.mxu0 0
        %2262 = vmatpush.bf16.msra.mxu0 %v2251
        %2263 = vmatmul.bf16.gmra.mxu0 %v1604
        %v2264 = vpop.f32.mrf.mxu0
        %v2265 = vadd.f32 0.0, %v2264
        %v2266 = vpop.f32.mrf.mxu0
        %v2267 = vadd.f32 0.0, %v2266
        %2268 = vmatmul.bf16.gmra.mxu0 %v1606
        %v2269 = vpop.f32.mrf.mxu0
        %v2270 = vadd.f32 0.0, %v2269
        %v2271 = vpop.f32.mrf.mxu0
        %v2272 = vadd.f32 0.0, %v2271
        %2273 = vmatmul.bf16.gmra.mxu0 %v1608
        %v2274 = vpop.f32.mrf.mxu0
        %v2275 = vadd.f32 0.0, %v2274
        %v2276 = vpop.f32.mrf.mxu0
        %v2277 = vadd.f32 0.0, %v2276
        %2278 = vmatmul.bf16.gmra.mxu0 %v1610
        %v2279 = vpop.f32.mrf.mxu0
        %v2280 = vadd.f32 0.0, %v2279
        %v2281 = vpop.f32.mrf.mxu0
        %v2282 = vadd.f32 0.0, %v2281
        %2283 = vmatmul.bf16.gmra.mxu0 %v1612
        %v2284 = vpop.f32.mrf.mxu0
        %v2285 = vadd.f32 0.0, %v2284
        %v2286 = vpop.f32.mrf.mxu0
        %v2287 = vadd.f32 0.0, %v2286
        %2288 = vmatmul.bf16.gmra.mxu0 %v1614
        %v2289 = vpop.f32.mrf.mxu0
        %v2290 = vadd.f32 0.0, %v2289
        %v2291 = vpop.f32.mrf.mxu0
        %v2292 = vadd.f32 0.0, %v2291
        %2293 = vmatmul.bf16.gmra.mxu0 %v2013
        %v2294 = vpop.f32.mrf.mxu0
        %v2295 = vadd.f32 0.0, %v2294
        %v2296 = vpop.f32.mrf.mxu0
        %v2297 = vadd.f32 0.0, %v2296
        %2298 = vmatmul.bf16.gmra.mxu0 %v2253
        %v2299 = vpop.f32.mrf.mxu0
        %v2300 = vadd.f32 0.0, %v2299
        %v2301 = vpop.f32.mrf.mxu0
        %v2302 = vadd.f32 0.0, %v2301
        %2303 = vdwg.mxu0
        %v2304 = vadd.f32 %v2228, %v2265
        %v2305 = vadd.f32 %v2229, %v2267
        %v2306 = vadd.f32 %v2230, %v2270
        %v2307 = vadd.f32 %v2231, %v2272
        %v2308 = vadd.f32 %v2232, %v2275
        %v2309 = vadd.f32 %v2233, %v2277
        %v2310 = vadd.f32 %v2234, %v2280
        %v2311 = vadd.f32 %v2235, %v2282
        %v2312 = vadd.f32 %v2236, %v2285
        %v2313 = vadd.f32 %v2237, %v2287
        %v2314 = vadd.f32 %v2238, %v2290
        %v2315 = vadd.f32 %v2239, %v2292
        %v2316 = vadd.f32 %v2240, %v2295
        %v2317 = vadd.f32 %v2241, %v2297
        %v2318 = vadd.f32 %v2242, %v2300
        %v2319 = vadd.f32 %v2243, %v2302
        %s2320 = scalar_lea.vmem %s6, 64
        %v2321 = vld [vmem:[%s2320] sm:$0xf]
        %v2322 = vld [vmem:[%s2320 + $0x4] sm:$0xf]
        %v2325 = vunpack.c.l.b16 %v1586
        %v2326 = vunpack.c.l.b16 %v1587
        %v2327 = vpack.c.b16 %v2326, %v2325
        %v2330 = vunpack.c.l.b16 %v2321
        %v2331 = vunpack.c.l.b16 %v2322
        %v2332 = vpack.c.b16 %v2331, %v2330
        %v2335 = vsel %vm1599, %v2327, 0
        %2337 = vmatpush.bf16.msra.mxu0 0
        %2338 = vmatpush.bf16.msra.mxu0 0
        %2339 = vmatpush.bf16.msra.mxu0 0
        %2340 = vmatpush.bf16.msra.mxu0 0
        %2341 = vmatpush.bf16.msra.mxu0 0
        %2342 = vmatpush.bf16.msra.mxu0 0
        %2343 = vmatpush.bf16.msra.mxu0 0
        %2344 = vmatpush.bf16.msra.mxu0 %v2332
        %2345 = vmatmul.bf16.gmra.mxu0 %v1840
        %v2346 = vpop.f32.mrf.mxu0
        %v2347 = vadd.f32 0.0, %v2346
        %v2348 = vpop.f32.mrf.mxu0
        %v2349 = vadd.f32 0.0, %v2348
        %2350 = vmatmul.bf16.gmra.mxu0 %v1843
        %v2351 = vpop.f32.mrf.mxu0
        %v2352 = vadd.f32 0.0, %v2351
        %v2353 = vpop.f32.mrf.mxu0
        %v2354 = vadd.f32 0.0, %v2353
        %2355 = vmatmul.bf16.gmra.mxu0 %v1846
        %v2356 = vpop.f32.mrf.mxu0
        %v2357 = vadd.f32 0.0, %v2356
        %v2358 = vpop.f32.mrf.mxu0
        %v2359 = vadd.f32 0.0, %v2358
        %2360 = vmatmul.bf16.gmra.mxu0 %v1849
        %v2361 = vpop.f32.mrf.mxu0
        %v2362 = vadd.f32 0.0, %v2361
        %v2363 = vpop.f32.mrf.mxu0
        %v2364 = vadd.f32 0.0, %v2363
        %2365 = vmatmul.bf16.gmra.mxu0 %v1852
        %v2366 = vpop.f32.mrf.mxu0
        %v2367 = vadd.f32 0.0, %v2366
        %v2368 = vpop.f32.mrf.mxu0
        %v2369 = vadd.f32 0.0, %v2368
        %2370 = vmatmul.bf16.gmra.mxu0 %v1855
        %v2371 = vpop.f32.mrf.mxu0
        %v2372 = vadd.f32 0.0, %v2371
        %v2373 = vpop.f32.mrf.mxu0
        %v2374 = vadd.f32 0.0, %v2373
        %2375 = vmatmul.bf16.gmra.mxu0 %v2095
        %v2376 = vpop.f32.mrf.mxu0
        %v2377 = vadd.f32 0.0, %v2376
        %v2378 = vpop.f32.mrf.mxu0
        %v2379 = vadd.f32 0.0, %v2378
        %2380 = vmatmul.bf16.gmra.mxu0 %v2335
        %v2381 = vpop.f32.mrf.mxu0
        %v2382 = vadd.f32 0.0, %v2381
        %v2383 = vpop.f32.mrf.mxu0
        %v2384 = vadd.f32 0.0, %v2383
        %2385 = vdwg.mxu0
        %v2386 = vadd.f32 %v2304, %v2347
        %v2387 = vadd.f32 %v2305, %v2349
        %v2388 = vadd.f32 %v2306, %v2352
        %v2389 = vadd.f32 %v2307, %v2354
        %v2390 = vadd.f32 %v2308, %v2357
        %v2391 = vadd.f32 %v2309, %v2359
        %v2392 = vadd.f32 %v2310, %v2362
        %v2393 = vadd.f32 %v2311, %v2364
        %v2394 = vadd.f32 %v2312, %v2367
        %v2395 = vadd.f32 %v2313, %v2369
        %v2396 = vadd.f32 %v2314, %v2372
        %v2397 = vadd.f32 %v2315, %v2374
        %v2398 = vadd.f32 %v2316, %v2377
        %v2399 = vadd.f32 %v2317, %v2379
        %v2400 = vadd.f32 %v2318, %v2382
        %v2401 = vadd.f32 %v2319, %v2384
        %v2402 = vld [vmem:[%s7] sm:$0x1]
        %v2404 = vperm.slane %v2402, 0
        %v2406 = vmul.f32 %v2386, %v2404
        %v2407 = vmul.f32 %v2387, %v2404
        %v2408 = vmul.f32 %v2388, %v2404
        %v2409 = vmul.f32 %v2389, %v2404
        %v2410 = vmul.f32 %v2390, %v2404
        %v2411 = vmul.f32 %v2391, %v2404
        %v2412 = vmul.f32 %v2392, %v2404
        %v2413 = vmul.f32 %v2393, %v2404
        %v2414 = vmul.f32 %v2394, %v2404
        %v2415 = vmul.f32 %v2395, %v2404
        %v2416 = vmul.f32 %v2396, %v2404
        %v2417 = vmul.f32 %v2397, %v2404
        %v2418 = vmul.f32 %v2398, %v2404
        %v2419 = vmul.f32 %v2399, %v2404
        %v2420 = vmul.f32 %v2400, %v2404
        %v2421 = vmul.f32 %v2401, %v2404
        %v2422 = vld [vmem:[%s8] sm:$0x1]
        %v2424 = vperm.slane %v2422, 0
        %v2426 = vadd.f32 %v2406, %v2424
        %v2427 = vadd.f32 %v2407, %v2424
        %v2428 = vadd.f32 %v2408, %v2424
        %v2429 = vadd.f32 %v2409, %v2424
        %v2430 = vadd.f32 %v2410, %v2424
        %v2431 = vadd.f32 %v2411, %v2424
        %v2432 = vadd.f32 %v2412, %v2424
        %v2433 = vadd.f32 %v2413, %v2424
        %v2434 = vadd.f32 %v2414, %v2424
        %v2435 = vadd.f32 %v2415, %v2424
        %v2436 = vadd.f32 %v2416, %v2424
        %v2437 = vadd.f32 %v2417, %v2424
        %v2438 = vadd.f32 %v2418, %v2424
        %v2439 = vadd.f32 %v2419, %v2424
        %v2440 = vadd.f32 %v2420, %v2424
        %v2441 = vadd.f32 %v2421, %v2424
        %v2442 = vmax.f32 %v2426, 0.0
        %v2443 = vmax.f32 %v2427, 0.0
        %v2444 = vmax.f32 %v2428, 0.0
        %v2445 = vmax.f32 %v2429, 0.0
        %v2446 = vmax.f32 %v2430, 0.0
        %v2447 = vmax.f32 %v2431, 0.0
        %v2448 = vmax.f32 %v2432, 0.0
        %v2449 = vmax.f32 %v2433, 0.0
        %v2450 = vmax.f32 %v2434, 0.0
        %v2451 = vmax.f32 %v2435, 0.0
        %v2452 = vmax.f32 %v2436, 0.0
        %v2453 = vmax.f32 %v2437, 0.0
        %v2454 = vmax.f32 %v2438, 0.0
        %v2455 = vmax.f32 %v2439, 0.0
        %v2456 = vmax.f32 %v2440, 0.0
        %v2457 = vmax.f32 %v2441, 0.0
        %2458 = vxpose.xlu0.b32.start [1/16] %v2442, 128
        %2459 = vxpose.xlu0.b32.cont [2/16] %v2443, 128
        %2460 = vxpose.xlu0.b32.cont [3/16] %v2444, 128
        %2461 = vxpose.xlu0.b32.cont [4/16] %v2445, 128
        %2462 = vxpose.xlu0.b32.cont [5/16] %v2446, 128
        %2463 = vxpose.xlu0.b32.cont [6/16] %v2447, 128
        %2464 = vxpose.xlu0.b32.cont [7/16] %v2448, 128
        %2465 = vxpose.xlu0.b32.cont [8/16] %v2449, 128
        %2466 = vxpose.xlu0.b32.cont [9/16] %v2450, 128
        %2467 = vxpose.xlu0.b32.cont [10/16] %v2451, 128
        %2468 = vxpose.xlu0.b32.cont [11/16] %v2452, 128
        %2469 = vxpose.xlu0.b32.cont [12/16] %v2453, 128
        %2470 = vxpose.xlu0.b32.cont [13/16] %v2454, 128
        %2471 = vxpose.xlu0.b32.cont [14/16] %v2455, 128
        %2472 = vxpose.xlu0.b32.cont [15/16] %v2456, 128
        %2473 = vxpose.xlu0.b32.end [16/16] %v2457, 128
        %v2474 = vpop.trf.xlu0
        %v2475 = vpop.trf.xlu0
        %v2476 = vpop.trf.xlu0
        %v2477 = vpop.trf.xlu0
        %v2478 = vpop.trf.xlu0
        %v2479 = vpop.trf.xlu0
        %v2480 = vpop.trf.xlu0
        %v2481 = vpop.trf.xlu0
        %v2482 = vpop.trf.xlu0
        %v2483 = vpop.trf.xlu0
        %v2484 = vpop.trf.xlu0
        %v2485 = vpop.trf.xlu0
        %v2486 = vpop.trf.xlu0
        %v2487 = vpop.trf.xlu0
        %v2488 = vpop.trf.xlu0
        %v2489 = vpop.trf.xlu0
        %v2490 = vpack.c.bf16 %v2475, %v2474
        %v2491 = vld [vmem:[%s9] sm:$0xf]
        %v2492 = vld [vmem:[%s9 + $0x4] sm:$0xf]
        %v2493 = vld [vmem:[%s9 + $0x8] sm:$0xf]
        %v2494 = vld [vmem:[%s9 + $0xc] sm:$0xf]
        %v2495 = vld [vmem:[%s9 + $0x10] sm:$0xf]
        %v2496 = vld [vmem:[%s9 + $0x14] sm:$0xf]
        %v2497 = vld [vmem:[%s9 + $0x18] sm:$0xf]
        %v2498 = vld [vmem:[%s9 + $0x1c] sm:$0xf]
        %v2507 = vunpack.c.l.b16 %v2491
        %v2508 = vunpack.c.l.b16 %v2492
        %v2509 = vunpack.c.l.b16 %v2493
        %v2510 = vunpack.c.l.b16 %v2494
        %v2511 = vunpack.c.l.b16 %v2495
        %v2512 = vunpack.c.l.b16 %v2496
        %v2513 = vunpack.c.l.b16 %v2497
        %v2514 = vunpack.c.l.b16 %v2498
        %v2515 = vpack.c.b16 %v2508, %v2507
        %v2516 = vpack.c.b16 %v2510, %v2509
        %v2517 = vpack.c.b16 %v2512, %v2511
        %v2518 = vpack.c.b16 %v2514, %v2513
        %v2520 = vsel %vm1599, %v2515, 0
        %v2523 = vsel %vm1599, %v2516, 0
        %v2526 = vsel %vm1599, %v2517, 0
        %v2529 = vsel %vm1599, %v2518, 0
        %2531 = vmatpush.bf16.msra.mxu0 0
        %2532 = vmatpush.bf16.msra.mxu0 0
        %2533 = vmatpush.bf16.msra.mxu0 0
        %2534 = vmatpush.bf16.msra.mxu0 0
        %2535 = vmatpush.bf16.msra.mxu0 0
        %2536 = vmatpush.bf16.msra.mxu0 0
        %2537 = vmatpush.bf16.msra.mxu0 0
        %2538 = vmatpush.bf16.msra.mxu0 %v2490
        %2539 = vmatmul.bf16.gmra.mxu0 %v2520
        %v2540 = vpop.f32.mrf.mxu0
        %v2541 = vadd.f32 0.0, %v2540
        %v2542 = vpop.f32.mrf.mxu0
        %v2543 = vadd.f32 0.0, %v2542
        %2544 = vmatmul.bf16.gmra.mxu0 %v2523
        %v2545 = vpop.f32.mrf.mxu0
        %v2546 = vadd.f32 0.0, %v2545
        %v2547 = vpop.f32.mrf.mxu0
        %v2548 = vadd.f32 0.0, %v2547
        %2549 = vmatmul.bf16.gmra.mxu0 %v2526
        %v2550 = vpop.f32.mrf.mxu0
        %v2551 = vadd.f32 0.0, %v2550
        %v2552 = vpop.f32.mrf.mxu0
        %v2553 = vadd.f32 0.0, %v2552
        %2554 = vmatmul.bf16.gmra.mxu0 %v2529
        %v2555 = vpop.f32.mrf.mxu0
        %v2556 = vadd.f32 0.0, %v2555
        %v2557 = vpop.f32.mrf.mxu0
        %v2558 = vadd.f32 0.0, %v2557
        %2559 = vdwg.mxu0
        %v2560 = vld [vmem:[%s10] sm:$0xff]
        %v2561 = vld [vmem:[%s10 + $0x8] sm:$0xff]
        %v2562 = vld [vmem:[%s10 + $0x10] sm:$0xff]
        %v2563 = vld [vmem:[%s10 + $0x18] sm:$0xff]
        %v2564 = vld [vmem:[%s10 + $0x20] sm:$0xff]
        %v2565 = vld [vmem:[%s10 + $0x28] sm:$0xff]
        %v2566 = vld [vmem:[%s10 + $0x30] sm:$0xff]
        %v2567 = vld [vmem:[%s10 + $0x38] sm:$0xff]
        %2569 = vset.pattern.permute.xlu0 0
        %2570 = vperm.xlu0 %2569, %v2560
        %v2571 = vpop.permute.xlu0 %2570
        %2574 = vset.pattern.permute.xlu0 0
        %2575 = vperm.xlu0 %2574, %v2561
        %v2576 = vpop.permute.xlu0 %2575
        %2579 = vset.pattern.permute.xlu0 0
        %2580 = vperm.xlu0 %2579, %v2562
        %v2581 = vpop.permute.xlu0 %2580
        %2584 = vset.pattern.permute.xlu0 0
        %2585 = vperm.xlu0 %2584, %v2563
        %v2586 = vpop.permute.xlu0 %2585
        %2589 = vset.pattern.permute.xlu0 0
        %2590 = vperm.xlu0 %2589, %v2564
        %v2591 = vpop.permute.xlu0 %2590
        %2594 = vset.pattern.permute.xlu0 0
        %2595 = vperm.xlu0 %2594, %v2565
        %v2596 = vpop.permute.xlu0 %2595
        %2599 = vset.pattern.permute.xlu0 0
        %2600 = vperm.xlu0 %2599, %v2566
        %v2601 = vpop.permute.xlu0 %2600
        %2604 = vset.pattern.permute.xlu0 0
        %2605 = vperm.xlu0 %2604, %v2567
        %v2606 = vpop.permute.xlu0 %2605
        %v2608 = vmul.f32 %v2541, %v2571
        %v2609 = vmul.f32 %v2543, %v2576
        %v2610 = vmul.f32 %v2546, %v2581
        %v2611 = vmul.f32 %v2548, %v2586
        %v2612 = vmul.f32 %v2551, %v2591
        %v2613 = vmul.f32 %v2553, %v2596
        %v2614 = vmul.f32 %v2556, %v2601
        %v2615 = vmul.f32 %v2558, %v2606
        %v2616 = vld [vmem:[%s11] sm:$0xff]
        %v2617 = vld [vmem:[%s11 + $0x8] sm:$0xff]
        %v2618 = vld [vmem:[%s11 + $0x10] sm:$0xff]
        %v2619 = vld [vmem:[%s11 + $0x18] sm:$0xff]
        %v2620 = vld [vmem:[%s11 + $0x20] sm:$0xff]
        %v2621 = vld [vmem:[%s11 + $0x28] sm:$0xff]
        %v2622 = vld [vmem:[%s11 + $0x30] sm:$0xff]
        %v2623 = vld [vmem:[%s11 + $0x38] sm:$0xff]
        %2625 = vset.pattern.permute.xlu0 0
        %2626 = vperm.xlu0 %2625, %v2616
        %v2627 = vpop.permute.xlu0 %2626
        %2630 = vset.pattern.permute.xlu0 0
        %2631 = vperm.xlu0 %2630, %v2617
        %v2632 = vpop.permute.xlu0 %2631
        %2635 = vset.pattern.permute.xlu0 0
        %2636 = vperm.xlu0 %2635, %v2618
        %v2637 = vpop.permute.xlu0 %2636
        %2640 = vset.pattern.permute.xlu0 0
        %2641 = vperm.xlu0 %2640, %v2619
        %v2642 = vpop.permute.xlu0 %2641
        %2645 = vset.pattern.permute.xlu0 0
        %2646 = vperm.xlu0 %2645, %v2620
        %v2647 = vpop.permute.xlu0 %2646
        %2650 = vset.pattern.permute.xlu0 0
        %2651 = vperm.xlu0 %2650, %v2621
        %v2652 = vpop.permute.xlu0 %2651
        %2655 = vset.pattern.permute.xlu0 0
        %2656 = vperm.xlu0 %2655, %v2622
        %v2657 = vpop.permute.xlu0 %2656
        %2660 = vset.pattern.permute.xlu0 0
        %2661 = vperm.xlu0 %2660, %v2623
        %v2662 = vpop.permute.xlu0 %2661
        %v2664 = vadd.f32 %v2608, %v2627
        %v2665 = vadd.f32 %v2609, %v2632
        %v2666 = vadd.f32 %v2610, %v2637
        %v2667 = vadd.f32 %v2611, %v2642
        %v2668 = vadd.f32 %v2612, %v2647
        %v2669 = vadd.f32 %v2613, %v2652
        %v2670 = vadd.f32 %v2614, %v2657
        %v2671 = vadd.f32 %v2615, %v2662
        %v2672 = vadd.f32 %v2664, %v568
        %v2673 = vadd.f32 %v2665, %v569
        %v2674 = vadd.f32 %v2666, %v570
        %v2675 = vadd.f32 %v2667, %v571
        %v2676 = vadd.f32 %v2668, %v572
        %v2677 = vadd.f32 %v2669, %v573
        %v2678 = vadd.f32 %v2670, %v574
        %v2679 = vadd.f32 %v2671, %v575
        %v2680 = vmax.f32 %v2672, 0.0
        %v2681 = vmax.f32 %v2673, 0.0
        %v2682 = vmax.f32 %v2674, 0.0
        %v2683 = vmax.f32 %v2675, 0.0
        %v2684 = vmax.f32 %v2676, 0.0
        %v2685 = vmax.f32 %v2677, 0.0
        %v2686 = vmax.f32 %v2678, 0.0
        %v2687 = vmax.f32 %v2679, 0.0
        %2688 = vst [vmem:[%s542] sm:$0xff] %v2680
        %2689 = vst [vmem:[%s542 + $0x8] sm:$0xff] %v2681
        %2690 = vst [vmem:[%s542 + $0x10] sm:$0xff] %v2682
        %2691 = vst [vmem:[%s542 + $0x18] sm:$0xff] %v2683
        %2692 = vst [vmem:[%s542 + $0x20] sm:$0xff] %v2684
        %2693 = vst [vmem:[%s542 + $0x28] sm:$0xff] %v2685
        %2694 = vst [vmem:[%s542 + $0x30] sm:$0xff] %v2686
        %2695 = vst [vmem:[%s542 + $0x38] sm:$0xff] %v2687
        %s2696 = sand.u32 %s321, 1
        %s2697 = scalar_lea.sflag [#allocation4], %s2696
        %s2698 = sand.u32 %s321, 1
        %s2699 = smul.addr %s2698, 64
        %s2700 = scalar_lea.vmem [#allocation3], %s2699
        // Predicated region
        $region107: #{tpu_custom_call.1} parent=101 // pred_check
          %p2701 = pneg %p331
        $region108: #{tpu_custom_call.1} parent=101 // pred_check_branch
          %2703 = sbr.rel (%p2701) target = $region110
        $region109: #{tpu_custom_call.1} parent=101 // pred_region
          %2705 = vsyncadd %s2697, 0
          %s2706 = smul.addr %s30, 16
          %s2707 = sadd.s32 %s31, %s2706
          %s2708 = smul.addr %s2707, 8
          %s2709 = scalar_lea.hbm %s12, %s2708
          %s2710 = sshll.u32 %s2700, 4
          %s2711 = int_to_ptr.vmem [resolvable:$true] %s2710
          %s2712 = sshll.u32 %s2709, 4
          %s2713 = int_to_ptr.hbm [resolvable:$true] %s2712
          %2718 = dma.vmem_to_hbm [thread:$0]  %s2711, 1024, %s2713, %s2697, 128, 256, 8
        $region110: #{tpu_custom_call.1} parent=101 // pred_fallthru
          _
      $region102: #{tpu_custom_call.1} parent=5 // pred_fallthru
        _
      %p2719 = scmp.le.s32.totalorder 2, %s21
      // Predicated region
      $region111: #{tpu_custom_call.1} parent=5 // pred_check
        %p2720 = pneg %p2719
      $region112: #{tpu_custom_call.1} parent=5 // pred_check_branch
        %2722 = sbr.rel (%p2720) target = $region114
      $region113: #{tpu_custom_call.1} parent=5 // pred_region
        %s2723 = ssub.s32 %s21, 2
        // Predicated region
        $region115: #{tpu_custom_call.1} parent=113 // pred_check
          %p2724 = pneg %p337
        $region116: #{tpu_custom_call.1} parent=113 // pred_check_branch
          %2726 = sbr.rel (%p2724) target = $region118
        $region117: #{tpu_custom_call.1} parent=113 // pred_region
          %s2727 = sand.u32 %s322, 1
          %s2728 = scalar_lea.sflag [#allocation4], %s2727
          %s2729 = sand.u32 %s322, 1
          %s2730 = smul.addr %s2729, 64
          %s2731 = scalar_lea.vmem [#allocation3], %s2730
          %2733 = dma.done %s2728, 1024
        $region118: #{tpu_custom_call.1} parent=113 // pred_fallthru
          _
      $region114: #{tpu_custom_call.1} parent=5 // pred_fallthru
        _
    $region6: #{tpu_custom_call.1} parent=1 // loop_footer
      %s25 = sadd.s32 1, %s21
    $region7: #{tpu_custom_call.1} parent=1 // loop_footer_branch
      %20 = sbr.rel target = $region3
    $region8: #{tpu_custom_call.1} parent=1 // loop_exit
      _
    %2734 = vsyncpa [#allocation4], 1
    %s2735 = scalar_lea.sflag [#allocation4], 1
    %2736 = vsyncpa %s2735, 1

</llo_original>
